<compile_context>
chip_gen: v5e
topology: v5e:2x2
jax: 0.10.0
libtpu: 0.0.40
codegen_flags: <defaults>
</compile_context>

<pallas_src>
import jax
import jax.numpy as jnp
from jax.experimental import pallas as pl
from jax.experimental.pallas import tpu as pltpu

TN = 128  # vocab tile width for the output projection (lane multiple)


# ---------------------------------------------------------------------------
# Pallas kernel: multi-layer GRU single-step + vocab-tiled output projection
# grid = (V // TN,), axis "arbitrary" (sequential; scratch carries h_final)
# ---------------------------------------------------------------------------
def decoder_kernel(emb_ref, h_ref, wih_ref, whh_ref, brz_ref, bin_ref, bhn_ref,
                   wout_ref, bout_ref, logits_ref, hnew_ref, hfin_ref):
    L = h_ref.shape[0]
    H = h_ref.shape[2]
    j = pl.program_id(0)

    # ---- GRU cell (all layers) runs once, on the first vocab tile -----------
    @pl.when(j == 0)
    def _gru():
        x = emb_ref[...]                                   # (B, E) bf16
        for l in range(L):                                 # static layer loop
            h = h_ref[l]                                   # (B, H) f32
            # fused gate pre-activations, gate order (r | z | n) along 3H
            gi = jnp.dot(x.astype(jnp.bfloat16), wih_ref[l],
                         preferred_element_type=jnp.float32)        # (B, 3H)
            gh = jnp.dot(h.astype(jnp.bfloat16), whh_ref[l],
                         preferred_element_type=jnp.float32)        # (B, 3H)
            # r and z share one fused sigmoid; their biases were pre-summed
            rz = jax.nn.sigmoid(gi[:, :2 * H] + gh[:, :2 * H] + brz_ref[l])
            r = rz[:, :H]
            z = rz[:, H:]
            n = jnp.tanh(gi[:, 2 * H:] + bin_ref[l]
                         + r * (gh[:, 2 * H:] + bhn_ref[l]))
            h_new = (1.0 - z) * n + z * h                  # PyTorch GRU update
            hnew_ref[l] = h_new
            x = h_new                                      # next layer input (dropout = identity)
        hfin_ref[...] = x                                  # final hidden for the projection

    # ---- output projection for this vocab tile ------------------------------
    logits_ref[...] = (
        jnp.dot(hfin_ref[...].astype(jnp.bfloat16), wout_ref[...],
                preferred_element_type=jnp.float32)
        + bout_ref[...]
    )


# ---------------------------------------------------------------------------
# Wrapper
# ---------------------------------------------------------------------------
def decoder_forward(input_token, hidden, params):
    """input_token: (B,) int32; hidden: (L, B, H) f32 -> (logits (B,V) f32, hidden (L,B,H) f32)."""
    emb = params["embedding"][input_token]                 # (B, E) bf16 gather (glue)
    L, B, H = hidden.shape
    E = params["w_ih"].shape[1]
    V = params["w_out"].shape[1]
    nv = pl.cdiv(V, TN)

    # rough resident-VMEM estimate (bytes) + headroom; clamped for v5e/v6e/v7x
    blk_bytes = (B * E * 2 + L * B * H * 4
                 + L * E * 3 * H * 2 + L * H * 3 * H * 2
                 + L * 2 * H * 4 + 2 * L * H * 4
                 + H * TN * 2 + TN * 4
                 + B * TN * 4 + L * B * H * 4
                 + B * H * 4)
    vmem_limit = int(min(max(4 * blk_bytes, 16 * 1024 * 1024), 48 * 1024 * 1024))

    logits, h_new = pl.pallas_call(
        decoder_kernel,
        out_shape=(
            jax.ShapeDtypeStruct((B, V), jnp.float32),
            jax.ShapeDtypeStruct((L, B, H), jnp.float32),
        ),
        grid=(nv,),
        in_specs=[
            pl.BlockSpec((B, E), lambda j: (0, 0)),              # embedded tokens
            pl.BlockSpec((L, B, H), lambda j: (0, 0, 0)),        # hidden (resident)
            pl.BlockSpec((L, E, 3 * H), lambda j: (0, 0, 0)),    # w_ih fused (resident)
            pl.BlockSpec((L, H, 3 * H), lambda j: (0, 0, 0)),    # w_hh fused (resident)
            pl.BlockSpec((L, 1, 2 * H), lambda j: (0, 0, 0)),    # b_rz (folded ih+hh)
            pl.BlockSpec((L, 1, H), lambda j: (0, 0, 0)),        # b_in
            pl.BlockSpec((L, 1, H), lambda j: (0, 0, 0)),        # b_hn
            pl.BlockSpec((H, TN), lambda j: (0, j)),             # w_out vocab tile (pipelined)
            pl.BlockSpec((1, TN), lambda j: (0, j)),             # b_out vocab tile
        ],
        out_specs=(
            pl.BlockSpec((B, TN), lambda j: (0, j)),             # logits vocab tile
            pl.BlockSpec((L, B, H), lambda j: (0, 0, 0)),        # new hidden
        ),
        scratch_shapes=[pltpu.VMEM((B, H), jnp.float32)],        # final-layer hidden carry
        input_output_aliases={1: 1},                             # hidden updated in place
        compiler_params=pltpu.CompilerParams(
            dimension_semantics=("arbitrary",),
            vmem_limit_bytes=vmem_limit,
        ),
    )(emb, hidden,
      params["w_ih"], params["w_hh"],
      params["b_rz"], params["b_in"], params["b_hn"],
      params["w_out"], params["b_out"])
    return logits, h_new


# ---------------------------------------------------------------------------
# Pure-JAX reference (same fused-gate math, mirrors torch GRU + Linear semantics)
# ---------------------------------------------------------------------------
def decoder_reference(input_token, hidden, params):
    H = hidden.shape[2]
    x = params["embedding"][input_token]
    L = hidden.shape[0]
    new_h = []
    for l in range(L):
        h = hidden[l]
        gi = jnp.dot(x.astype(jnp.bfloat16), params["w_ih"][l],
                     preferred_element_type=jnp.float32)
        gh = jnp.dot(h.astype(jnp.bfloat16), params["w_hh"][l],
                     preferred_element_type=jnp.float32)
        rz = jax.nn.sigmoid(gi[:, :2 * H] + gh[:, :2 * H] + params["b_rz"][l])
        r, z = rz[:, :H], rz[:, H:]
        n = jnp.tanh(gi[:, 2 * H:] + params["b_in"][l]
                     + r * (gh[:, 2 * H:] + params["b_hn"][l]))
        h_new = (1.0 - z) * n + z * h
        new_h.append(h_new)
        x = h_new
    logits = jnp.dot(x.astype(jnp.bfloat16), params["w_out"],
                     preferred_element_type=jnp.float32) + params["b_out"]
    return logits, jnp.stack(new_h, axis=0)


# ---------------------------------------------------------------------------
# Deterministic parameter init (fused / bf16 layout)
# ---------------------------------------------------------------------------
def init_params(key, vocab_size, emb_dim, hidden_dim, num_layers):
    if num_layers > 1:
        # stacked per-layer w_ih requires layer-0 input dim == hidden dim
        assert emb_dim == hidden_dim, "stacked w_ih layout assumes emb_dim == hidden_dim"
    ks = jax.random.split(key, 8)
    emb = 0.1 * jax.random.normal(ks[0], (vocab_size, emb_dim), jnp.float32)
    emb = emb.at[0].set(0.0)                               # padding_idx=0

    # per-gate draws (gate order r, z, n), then fuse along the output dim
    wih_g = 0.1 * jax.random.normal(ks[1], (num_layers, 3, emb_dim, hidden_dim), jnp.float32)
    whh_g = 0.1 * jax.random.normal(ks[2], (num_layers, 3, hidden_dim, hidden_dim), jnp.float32)
    bih_g = 0.1 * jax.random.normal(ks[3], (num_layers, 3, hidden_dim), jnp.float32)
    bhh_g = 0.1 * jax.random.normal(ks[4], (num_layers, 3, hidden_dim), jnp.float32)

    w_ih = jnp.concatenate([wih_g[:, 0], wih_g[:, 1], wih_g[:, 2]], axis=-1)   # (L, E, 3H)
    w_hh = jnp.concatenate([whh_g[:, 0], whh_g[:, 1], whh_g[:, 2]], axis=-1)   # (L, H, 3H)
    # fold r/z biases (b_ih + b_hh); keep n-gate biases separate (r * gh_n term)
    b_rz = jnp.concatenate([bih_g[:, 0] + bhh_g[:, 0],
                            bih_g[:, 1] + bhh_g[:, 1]], axis=-1)[:, None, :]   # (L, 1, 2H)
    b_in = bih_g[:, 2][:, None, :]                                             # (L, 1, H)
    b_hn = bhh_g[:, 2][:, None, :]                                             # (L, 1, H)

    w_out = 0.1 * jax.random.normal(ks[5], (hidden_dim, vocab_size), jnp.float32)
    b_out = 0.1 * jax.random.normal(ks[6], (1, vocab_size), jnp.float32)

    return dict(
        embedding=emb.astype(jnp.bfloat16),
        w_ih=w_ih.astype(jnp.bfloat16),
        w_hh=w_hh.astype(jnp.bfloat16),
        b_rz=b_rz, b_in=b_in, b_hn=b_hn,
        w_out=w_out.astype(jnp.bfloat16),
        b_out=b_out,
    )


if __name__ == "__main__":
    # hardware-aligned small shapes: B multiple of 8, E/H/V multiples of 128
    VOCAB, EMB, HID, LAYERS, BATCH = 256, 128, 128, 2, 8
    key = jax.random.PRNGKey(0)
    k_tok, k_hid, k_par = jax.random.split(key, 3)

    params = init_params(k_par, VOCAB, EMB, HID, LAYERS)
    input_token = jax.random.randint(k_tok, (BATCH,), 0, VOCAB, dtype=jnp.int32)
    hidden = 0.1 * jax.random.normal(k_hid, (LAYERS, BATCH, HID), jnp.float32)

    # reference first (robust against the in-place hidden aliasing in the kernel call)
    ref_logits, ref_h = decoder_reference(input_token, hidden, params)
    jax.block_until_ready((ref_logits, ref_h))

    fwd = jax.jit(decoder_forward)
    logits, h_new = fwd(input_token, hidden, params)
    jax.block_until_ready((logits, h_new))

    assert logits.shape == (BATCH, VOCAB) and h_new.shape == (LAYERS, BATCH, HID)
    # bf16 weights / MXU accumulation -> relaxed tolerance vs. the f32-activation reference
    assert jnp.allclose(logits, ref_logits, atol=2e-2, rtol=2e-2), (
        float(jnp.max(jnp.abs(logits - ref_logits))))
    assert jnp.allclose(h_new, ref_h, atol=2e-2, rtol=2e-2), (
        float(jnp.max(jnp.abs(h_new - ref_h))))

    print("KERNEL_OK")
</pallas_src>

<mosaic_0001>
module attributes {stable_mosaic.version = 11 : i64} {
  func.func @decoder_kernel(%arg0: i32, %arg1: memref<8x128xbf16, #tpu.memory_space<vmem>>, %arg2: memref<2x8x128xf32, #tpu.memory_space<vmem>>, %arg3: memref<2x128x384xbf16, #tpu.memory_space<vmem>>, %arg4: memref<2x128x384xbf16, #tpu.memory_space<vmem>>, %arg5: memref<2x1x256xf32, #tpu.memory_space<vmem>>, %arg6: memref<2x1x128xf32, #tpu.memory_space<vmem>>, %arg7: memref<2x1x128xf32, #tpu.memory_space<vmem>>, %arg8: memref<128x128xbf16, #tpu.memory_space<vmem>>, %arg9: memref<1x128xf32, #tpu.memory_space<vmem>>, %arg10: memref<8x128xf32, #tpu.memory_space<vmem>>, %arg11: memref<2x8x128xf32, #tpu.memory_space<vmem>>, %arg12: memref<8x128xf32, #tpu.memory_space<vmem>>) attributes {dimension_semantics = [#tpu.dimension_semantics<arbitrary>], iteration_bounds = array<i64: 2>, scalar_prefetch = 0 : i64, scratch_operands = 1 : i64, tpu.core_type = #tpu.core_type<tc>, window_params = [{pipeline_mode = #tpu.pipeline_mode<synchronous>, transform_indices = @transform_0, window_bounds = array<i64: 8, 128>}, {pipeline_mode = #tpu.pipeline_mode<synchronous>, transform_indices = @transform_1, window_bounds = array<i64: 2, 8, 128>}, {pipeline_mode = #tpu.pipeline_mode<synchronous>, transform_indices = @transform_2, window_bounds = array<i64: 2, 128, 384>}, {pipeline_mode = #tpu.pipeline_mode<synchronous>, transform_indices = @transform_3, window_bounds = array<i64: 2, 128, 384>}, {pipeline_mode = #tpu.pipeline_mode<synchronous>, transform_indices = @transform_4, window_bounds = array<i64: 2, 1, 256>}, {pipeline_mode = #tpu.pipeline_mode<synchronous>, transform_indices = @transform_5, window_bounds = array<i64: 2, 1, 128>}, {pipeline_mode = #tpu.pipeline_mode<synchronous>, transform_indices = @transform_6, window_bounds = array<i64: 2, 1, 128>}, {transform_indices = @transform_7, window_bounds = array<i64: 128, 128>}, {transform_indices = @transform_8, window_bounds = array<i64: 1, 128>}, {transform_indices = @transform_9, window_bounds = array<i64: 8, 128>}, {pipeline_mode = #tpu.pipeline_mode<synchronous>, transform_indices = @transform_10, window_bounds = array<i64: 2, 8, 128>}]} {
    %c0_i32 = arith.constant 0 : i32
    %0 = arith.cmpi eq, %arg0, %c0_i32 : i32
    %1 = arith.extui %0 : i1 to i32
    %c0_i32_0 = arith.constant 0 : i32
    %2 = arith.cmpi ne, %1, %c0_i32_0 : i32
    scf.if %2 {
      %c0_8 = arith.constant 0 : index
      %c0_9 = arith.constant 0 : index
      %11 = vector.load %arg1[%c0_8, %c0_9] : memref<8x128xbf16, #tpu.memory_space<vmem>>, vector<8x128xbf16>
      %c0_10 = arith.constant 0 : index
      %c0_11 = arith.constant 0 : index
      %c0_12 = arith.constant 0 : index
      %12 = vector.load %arg2[%c0_10, %c0_11, %c0_12] : memref<2x8x128xf32, #tpu.memory_space<vmem>>, vector<1x8x128xf32>
      %13 = vector.shape_cast %12 : vector<1x8x128xf32> to vector<8x128xf32>
      %c0_13 = arith.constant 0 : index
      %c0_14 = arith.constant 0 : index
      %c0_15 = arith.constant 0 : index
      %14 = vector.load %arg3[%c0_13, %c0_14, %c0_15] : memref<2x128x384xbf16, #tpu.memory_space<vmem>>, vector<1x128x384xbf16>
      %15 = vector.shape_cast %14 : vector<1x128x384xbf16> to vector<128x384xbf16>
      %cst_16 = arith.constant dense<0.000000e+00> : vector<8x384xf32>
      %16 = tpu.matmul %11, %15, %cst_16 {dimension_numbers = #tpu.dot_dimension_numbers<[1], [0], [0], [1], [0, 0, 1, 1], [], []>} : vector<8x128xbf16>, vector<128x384xbf16>, vector<8x384xf32> -> vector<8x384xf32>
      %17 = arith.truncf %13 : vector<8x128xf32> to vector<8x128xbf16>
      %c0_17 = arith.constant 0 : index
      %c0_18 = arith.constant 0 : index
      %c0_19 = arith.constant 0 : index
      %18 = vector.load %arg4[%c0_17, %c0_18, %c0_19] : memref<2x128x384xbf16, #tpu.memory_space<vmem>>, vector<1x128x384xbf16>
      %19 = vector.shape_cast %18 : vector<1x128x384xbf16> to vector<128x384xbf16>
      %cst_20 = arith.constant dense<0.000000e+00> : vector<8x384xf32>
      %20 = tpu.matmul %17, %19, %cst_20 {dimension_numbers = #tpu.dot_dimension_numbers<[1], [0], [0], [1], [0, 0, 1, 1], [], []>} : vector<8x128xbf16>, vector<128x384xbf16>, vector<8x384xf32> -> vector<8x384xf32>
      %21 = vector.extract_strided_slice %16 {offsets = [0, 0], sizes = [8, 256], strides = [1, 1]} : vector<8x384xf32> to vector<8x256xf32>
      %22 = vector.extract_strided_slice %20 {offsets = [0, 0], sizes = [8, 256], strides = [1, 1]} : vector<8x384xf32> to vector<8x256xf32>
      %23 = arith.addf %21, %22 : vector<8x256xf32>
      %c0_21 = arith.constant 0 : index
      %c0_22 = arith.constant 0 : index
      %c0_23 = arith.constant 0 : index
      %24 = vector.load %arg5[%c0_21, %c0_22, %c0_23] : memref<2x1x256xf32, #tpu.memory_space<vmem>>, vector<1x1x256xf32>
      %25 = vector.shape_cast %24 : vector<1x1x256xf32> to vector<1x256xf32>
      %26 = vector.broadcast %25 : vector<1x256xf32> to vector<8x256xf32>
      %27 = arith.addf %23, %26 : vector<8x256xf32>
      %28 = arith.negf %27 : vector<8x256xf32>
      %29 = math.exp %28 : vector<8x256xf32>
      %cst_24 = arith.constant 1.000000e+00 : f32
      %30 = vector.broadcast %cst_24 : f32 to vector<8x256xf32>
      %31 = arith.addf %30, %29 : vector<8x256xf32>
      %32 = arith.divf %30, %31 : vector<8x256xf32>
      %33 = vector.extract_strided_slice %32 {offsets = [0, 0], sizes = [8, 128], strides = [1, 1]} : vector<8x256xf32> to vector<8x128xf32>
      %34 = vector.extract_strided_slice %32 {offsets = [0, 128], sizes = [8, 128], strides = [1, 1]} : vector<8x256xf32> to vector<8x128xf32>
      %35 = vector.extract_strided_slice %16 {offsets = [0, 256], sizes = [8, 128], strides = [1, 1]} : vector<8x384xf32> to vector<8x128xf32>
      %c0_25 = arith.constant 0 : index
      %c0_26 = arith.constant 0 : index
      %c0_27 = arith.constant 0 : index
      %36 = vector.load %arg6[%c0_25, %c0_26, %c0_27] : memref<2x1x128xf32, #tpu.memory_space<vmem>>, vector<1x1x128xf32>
      %37 = vector.shape_cast %36 : vector<1x1x128xf32> to vector<1x128xf32>
      %38 = vector.broadcast %37 : vector<1x128xf32> to vector<8x128xf32>
      %39 = arith.addf %35, %38 : vector<8x128xf32>
      %40 = vector.extract_strided_slice %20 {offsets = [0, 256], sizes = [8, 128], strides = [1, 1]} : vector<8x384xf32> to vector<8x128xf32>
      %c0_28 = arith.constant 0 : index
      %c0_29 = arith.constant 0 : index
      %c0_30 = arith.constant 0 : index
      %41 = vector.load %arg7[%c0_28, %c0_29, %c0_30] : memref<2x1x128xf32, #tpu.memory_space<vmem>>, vector<1x1x128xf32>
      %42 = vector.shape_cast %41 : vector<1x1x128xf32> to vector<1x128xf32>
      %43 = vector.broadcast %42 : vector<1x128xf32> to vector<8x128xf32>
      %44 = arith.addf %40, %43 : vector<8x128xf32>
      %45 = arith.mulf %33, %44 : vector<8x128xf32>
      %46 = arith.addf %39, %45 : vector<8x128xf32>
      %47 = math.tanh %46 : vector<8x128xf32>
      %cst_31 = arith.constant 1.000000e+00 : f32
      %48 = vector.broadcast %cst_31 : f32 to vector<8x128xf32>
      %49 = arith.subf %48, %34 : vector<8x128xf32>
      %50 = arith.mulf %49, %47 : vector<8x128xf32>
      %51 = arith.mulf %34, %13 : vector<8x128xf32>
      %52 = arith.addf %50, %51 : vector<8x128xf32>
      %c0_32 = arith.constant 0 : index
      %c0_33 = arith.constant 0 : index
      %c0_34 = arith.constant 0 : index
      %53 = vector.load %arg11[%c0_32, %c0_33, %c0_34] : memref<2x8x128xf32, #tpu.memory_space<vmem>>, vector<1x8x128xf32>
      %54 = vector.shape_cast %53 : vector<1x8x128xf32> to vector<8x128xf32>
      %55 = vector.shape_cast %52 : vector<8x128xf32> to vector<1x8x128xf32>
      tpu.vector_store %arg11[%c0_32, %c0_33, %c0_34], %55 {strides = array<i32>} : memref<2x8x128xf32, #tpu.memory_space<vmem>>, vector<1x8x128xf32>,
      %c1 = arith.constant 1 : index
      %c0_35 = arith.constant 0 : index
      %c0_36 = arith.constant 0 : index
      %56 = vector.load %arg2[%c1, %c0_35, %c0_36] : memref<2x8x128xf32, #tpu.memory_space<vmem>>, vector<1x8x128xf32>
      %57 = vector.shape_cast %56 : vector<1x8x128xf32> to vector<8x128xf32>
      %58 = arith.truncf %52 : vector<8x128xf32> to vector<8x128xbf16>
      %c1_37 = arith.constant 1 : index
      %c0_38 = arith.constant 0 : index
      %c0_39 = arith.constant 0 : index
      %59 = vector.load %arg3[%c1_37, %c0_38, %c0_39] : memref<2x128x384xbf16, #tpu.memory_space<vmem>>, vector<1x128x384xbf16>
      %60 = vector.shape_cast %59 : vector<1x128x384xbf16> to vector<128x384xbf16>
      %cst_40 = arith.constant dense<0.000000e+00> : vector<8x384xf32>
      %61 = tpu.matmul %58, %60, %cst_40 {dimension_numbers = #tpu.dot_dimension_numbers<[1], [0], [0], [1], [0, 0, 1, 1], [], []>} : vector<8x128xbf16>, vector<128x384xbf16>, vector<8x384xf32> -> vector<8x384xf32>
      %62 = arith.truncf %57 : vector<8x128xf32> to vector<8x128xbf16>
      %c1_41 = arith.constant 1 : index
      %c0_42 = arith.constant 0 : index
      %c0_43 = arith.constant 0 : index
      %63 = vector.load %arg4[%c1_41, %c0_42, %c0_43] : memref<2x128x384xbf16, #tpu.memory_space<vmem>>, vector<1x128x384xbf16>
      %64 = vector.shape_cast %63 : vector<1x128x384xbf16> to vector<128x384xbf16>
      %cst_44 = arith.constant dense<0.000000e+00> : vector<8x384xf32>
      %65 = tpu.matmul %62, %64, %cst_44 {dimension_numbers = #tpu.dot_dimension_numbers<[1], [0], [0], [1], [0, 0, 1, 1], [], []>} : vector<8x128xbf16>, vector<128x384xbf16>, vector<8x384xf32> -> vector<8x384xf32>
      %66 = vector.extract_strided_slice %61 {offsets = [0, 0], sizes = [8, 256], strides = [1, 1]} : vector<8x384xf32> to vector<8x256xf32>
      %67 = vector.extract_strided_slice %65 {offsets = [0, 0], sizes = [8, 256], strides = [1, 1]} : vector<8x384xf32> to vector<8x256xf32>
      %68 = arith.addf %66, %67 : vector<8x256xf32>
      %c1_45 = arith.constant 1 : index
      %c0_46 = arith.constant 0 : index
      %c0_47 = arith.constant 0 : index
      %69 = vector.load %arg5[%c1_45, %c0_46, %c0_47] : memref<2x1x256xf32, #tpu.memory_space<vmem>>, vector<1x1x256xf32>
      %70 = vector.shape_cast %69 : vector<1x1x256xf32> to vector<1x256xf32>
      %71 = vector.broadcast %70 : vector<1x256xf32> to vector<8x256xf32>
      %72 = arith.addf %68, %71 : vector<8x256xf32>
      %73 = arith.negf %72 : vector<8x256xf32>
      %74 = math.exp %73 : vector<8x256xf32>
      %cst_48 = arith.constant 1.000000e+00 : f32
      %75 = vector.broadcast %cst_48 : f32 to vector<8x256xf32>
      %76 = arith.addf %75, %74 : vector<8x256xf32>
      %77 = arith.divf %75, %76 : vector<8x256xf32>
      %78 = vector.extract_strided_slice %77 {offsets = [0, 0], sizes = [8, 128], strides = [1, 1]} : vector<8x256xf32> to vector<8x128xf32>
      %79 = vector.extract_strided_slice %77 {offsets = [0, 128], sizes = [8, 128], strides = [1, 1]} : vector<8x256xf32> to vector<8x128xf32>
      %80 = vector.extract_strided_slice %61 {offsets = [0, 256], sizes = [8, 128], strides = [1, 1]} : vector<8x384xf32> to vector<8x128xf32>
      %c1_49 = arith.constant 1 : index
      %c0_50 = arith.constant 0 : index
      %c0_51 = arith.constant 0 : index
      %81 = vector.load %arg6[%c1_49, %c0_50, %c0_51] : memref<2x1x128xf32, #tpu.memory_space<vmem>>, vector<1x1x128xf32>
      %82 = vector.shape_cast %81 : vector<1x1x128xf32> to vector<1x128xf32>
      %83 = vector.broadcast %82 : vector<1x128xf32> to vector<8x128xf32>
      %84 = arith.addf %80, %83 : vector<8x128xf32>
      %85 = vector.extract_strided_slice %65 {offsets = [0, 256], sizes = [8, 128], strides = [1, 1]} : vector<8x384xf32> to vector<8x128xf32>
      %c1_52 = arith.constant 1 : index
      %c0_53 = arith.constant 0 : index
      %c0_54 = arith.constant 0 : index
      %86 = vector.load %arg7[%c1_52, %c0_53, %c0_54] : memref<2x1x128xf32, #tpu.memory_space<vmem>>, vector<1x1x128xf32>
      %87 = vector.shape_cast %86 : vector<1x1x128xf32> to vector<1x128xf32>
      %88 = vector.broadcast %87 : vector<1x128xf32> to vector<8x128xf32>
      %89 = arith.addf %85, %88 : vector<8x128xf32>
      %90 = arith.mulf %78, %89 : vector<8x128xf32>
      %91 = arith.addf %84, %90 : vector<8x128xf32>
      %92 = math.tanh %91 : vector<8x128xf32>
      %cst_55 = arith.constant 1.000000e+00 : f32
      %93 = vector.broadcast %cst_55 : f32 to vector<8x128xf32>
      %94 = arith.subf %93, %79 : vector<8x128xf32>
      %95 = arith.mulf %94, %92 : vector<8x128xf32>
      %96 = arith.mulf %79, %57 : vector<8x128xf32>
      %97 = arith.addf %95, %96 : vector<8x128xf32>
      %c1_56 = arith.constant 1 : index
      %c0_57 = arith.constant 0 : index
      %c0_58 = arith.constant 0 : index
      %98 = vector.load %arg11[%c1_56, %c0_57, %c0_58] : memref<2x8x128xf32, #tpu.memory_space<vmem>>, vector<1x8x128xf32>
      %99 = vector.shape_cast %98 : vector<1x8x128xf32> to vector<8x128xf32>
      %100 = vector.shape_cast %97 : vector<8x128xf32> to vector<1x8x128xf32>
      tpu.vector_store %arg11[%c1_56, %c0_57, %c0_58], %100 {strides = array<i32>} : memref<2x8x128xf32, #tpu.memory_space<vmem>>, vector<1x8x128xf32>,
      %c0_59 = arith.constant 0 : index
      %c0_60 = arith.constant 0 : index
      %101 = vector.load %arg12[%c0_59, %c0_60] : memref<8x128xf32, #tpu.memory_space<vmem>>, vector<8x128xf32>
      tpu.vector_store %arg12[%c0_59, %c0_60], %97 {strides = array<i32>} : memref<8x128xf32, #tpu.memory_space<vmem>>, vector<8x128xf32>,
    } else {
    }
    %c0 = arith.constant 0 : index
    %c0_1 = arith.constant 0 : index
    %3 = vector.load %arg12[%c0, %c0_1] : memref<8x128xf32, #tpu.memory_space<vmem>>, vector<8x128xf32>
    %4 = arith.truncf %3 : vector<8x128xf32> to vector<8x128xbf16>
    %c0_2 = arith.constant 0 : index
    %c0_3 = arith.constant 0 : index
    %5 = vector.load %arg8[%c0_2, %c0_3] : memref<128x128xbf16, #tpu.memory_space<vmem>>, vector<128x128xbf16>
    %cst = arith.constant dense<0.000000e+00> : vector<8x128xf32>
    %6 = tpu.matmul %4, %5, %cst {dimension_numbers = #tpu.dot_dimension_numbers<[1], [0], [0], [1], [0, 0, 1, 1], [], []>} : vector<8x128xbf16>, vector<128x128xbf16>, vector<8x128xf32> -> vector<8x128xf32>
    %c0_4 = arith.constant 0 : index
    %c0_5 = arith.constant 0 : index
    %7 = vector.load %arg9[%c0_4, %c0_5] : memref<1x128xf32, #tpu.memory_space<vmem>>, vector<1x128xf32>
    %8 = vector.broadcast %7 : vector<1x128xf32> to vector<8x128xf32>
    %9 = arith.addf %6, %8 : vector<8x128xf32>
    %c0_6 = arith.constant 0 : index
    %c0_7 = arith.constant 0 : index
    %10 = vector.load %arg10[%c0_6, %c0_7] : memref<8x128xf32, #tpu.memory_space<vmem>>, vector<8x128xf32>
    tpu.vector_store %arg10[%c0_6, %c0_7], %9 {strides = array<i32>} : memref<8x128xf32, #tpu.memory_space<vmem>>, vector<8x128xf32>,
    return
  }
  func.func @transform_0(%arg0: i32) -> (i32, i32) {
    %c0_i32 = arith.constant 0 : i32
    %c0_i32_0 = arith.constant 0 : i32
    %c0_i32_1 = arith.constant 0 : i32
    return %c0_i32, %c0_i32_0 : i32, i32
  }
  func.func @transform_1(%arg0: i32) -> (i32, i32, i32) {
    %c0_i32 = arith.constant 0 : i32
    %c0_i32_0 = arith.constant 0 : i32
    %c0_i32_1 = arith.constant 0 : i32
    %c0_i32_2 = arith.constant 0 : i32
    return %c0_i32, %c0_i32_0, %c0_i32_1 : i32, i32, i32
  }
  func.func @transform_2(%arg0: i32) -> (i32, i32, i32) {
    %c0_i32 = arith.constant 0 : i32
    %c0_i32_0 = arith.constant 0 : i32
    %c0_i32_1 = arith.constant 0 : i32
    %c0_i32_2 = arith.constant 0 : i32
    return %c0_i32, %c0_i32_0, %c0_i32_1 : i32, i32, i32
  }
  func.func @transform_3(%arg0: i32) -> (i32, i32, i32) {
    %c0_i32 = arith.constant 0 : i32
    %c0_i32_0 = arith.constant 0 : i32
    %c0_i32_1 = arith.constant 0 : i32
    %c0_i32_2 = arith.constant 0 : i32
    return %c0_i32, %c0_i32_0, %c0_i32_1 : i32, i32, i32
  }
  func.func @transform_4(%arg0: i32) -> (i32, i32, i32) {
    %c0_i32 = arith.constant 0 : i32
    %c0_i32_0 = arith.constant 0 : i32
    %c0_i32_1 = arith.constant 0 : i32
    %c0_i32_2 = arith.constant 0 : i32
    return %c0_i32, %c0_i32_0, %c0_i32_1 : i32, i32, i32
  }
  func.func @transform_5(%arg0: i32) -> (i32, i32, i32) {
    %c0_i32 = arith.constant 0 : i32
    %c0_i32_0 = arith.constant 0 : i32
    %c0_i32_1 = arith.constant 0 : i32
    %c0_i32_2 = arith.constant 0 : i32
    return %c0_i32, %c0_i32_0, %c0_i32_1 : i32, i32, i32
  }
  func.func @transform_6(%arg0: i32) -> (i32, i32, i32) {
    %c0_i32 = arith.constant 0 : i32
    %c0_i32_0 = arith.constant 0 : i32
    %c0_i32_1 = arith.constant 0 : i32
    %c0_i32_2 = arith.constant 0 : i32
    return %c0_i32, %c0_i32_0, %c0_i32_1 : i32, i32, i32
  }
  func.func @transform_7(%arg0: i32) -> (i32, i32) {
    %c0_i32 = arith.constant 0 : i32
    %c0_i32_0 = arith.constant 0 : i32
    return %c0_i32, %arg0 : i32, i32
  }
  func.func @transform_8(%arg0: i32) -> (i32, i32) {
    %c0_i32 = arith.constant 0 : i32
    %c0_i32_0 = arith.constant 0 : i32
    return %c0_i32, %arg0 : i32, i32
  }
  func.func @transform_9(%arg0: i32) -> (i32, i32) {
    %c0_i32 = arith.constant 0 : i32
    %c0_i32_0 = arith.constant 0 : i32
    return %c0_i32, %arg0 : i32, i32
  }
  func.func @transform_10(%arg0: i32) -> (i32, i32, i32) {
    %c0_i32 = arith.constant 0 : i32
    %c0_i32_0 = arith.constant 0 : i32
    %c0_i32_1 = arith.constant 0 : i32
    %c0_i32_2 = arith.constant 0 : i32
    return %c0_i32, %c0_i32_0, %c0_i32_1 : i32, i32, i32
  }
}

</mosaic_0001>

<llo_original>
// kernel: decoder_forward.1
$region0: #{decoder_forward.1}
  #allocation0 [shape = 'u32[]', space=smem, size = 0x4, offset = 0x4, fixed_abs, tag = 'smem constant byte address 0x4 - core index']
  #allocation1 [shape = 'u32[72,128]{1,0:T(1,128)}', space=vmem, size = 0x9000, scoped, tag = 'internal scratch']
  #allocation2 [shape = 'f32[8,128]{1,0:T(8,128)}', space=vmem, size = 0x1000, scoped, tag = 'scratch operand']
  %s0 = inlined_call_operand.vmem [shape: bf16[8,128], index: 0, kind: input, shape index: {}]
  %s1 = inlined_call_operand.hbm [shape: f32[2,8,128], index: 1, kind: input, shape index: {}, may-alias: {1,10}]
  %s2 = inlined_call_operand.hbm [shape: bf16[2,128,384], index: 2, kind: input, shape index: {}]
  %s3 = inlined_call_operand.hbm [shape: bf16[2,128,384], index: 3, kind: input, shape index: {}]
  %s4 = inlined_call_operand.vmem [shape: f32[2,1,256], index: 4, kind: input, shape index: {}]
  %s5 = inlined_call_operand.vmem [shape: f32[2,1,128], index: 5, kind: input, shape index: {}]
  %s6 = inlined_call_operand.vmem [shape: f32[2,1,128], index: 6, kind: input, shape index: {}]
  %s7 = inlined_call_operand.hbm [shape: bf16[128,256], index: 7, kind: input, shape index: {}]
  %s8 = inlined_call_operand.vmem [shape: f32[1,256], index: 8, kind: input, shape index: {}]
  %s9 = inlined_call_operand.hbm [shape: f32[8,256], index: 9, kind: output, shape index: {0}]
  %s10 = inlined_call_operand.hbm [shape: f32[2,8,128], index: 10, kind: output, shape index: {1}, may-alias: {1,10}]
  %11 = xla_tuple %s9, %s10
  %s12 = sld [smem:[#allocation0]]
  $region97: #{decoder_forward.1} parent=0
    _
  %s14 = ssub.s32 1, %s12
  %s15 = scalar_select 0, %s14, %s12
  $region1: #{decoder_forward.1} parent=0
    #allocation3 [shape = 'u8[8192]{0}', space=vmem, size = 0x2000, scoped, tag = 'input window, operand 1, single buffered']
    #allocation4 [shape = 's32[2]{0}', space=sflag, size = 0x8, scoped, tag = 'scoped memory for decoder_forward.1']
    #allocation5 [shape = 's32[2]{0}', space=sflag, size = 0x8, scoped, tag = 'scoped memory for decoder_forward.1']
    #allocation6 [shape = 'u8[196608]{0}', space=vmem, size = 0x30000, scoped, tag = 'input window, operand 2, single buffered']
    #allocation7 [shape = 's32[1]{0}', space=sflag, size = 0x4, scoped, tag = 'scoped memory for decoder_forward.1']
    #allocation8 [shape = 'u8[196608]{0}', space=vmem, size = 0x30000, scoped, tag = 'input window, operand 3, single buffered']
    #allocation9 [shape = 'u8[65536]{0}', space=vmem, size = 0x10000, scoped, tag = 'input window, operand 7']
    #allocation10 [shape = 's32[2]{0}', space=sflag, size = 0x8, scoped, tag = 'scoped memory for decoder_forward.1']
    #allocation11 [shape = 'u8[8192]{0}', space=vmem, size = 0x2000, scoped, tag = 'output window, operand 0']
    #allocation12 [shape = 'u8[8192]{0}', space=vmem, size = 0x2000, scoped, tag = 'output window, operand 1, single buffered']
    #allocation13 [shape = 's32[1]{0}', space=sflag, size = 0x4, scoped, tag = 'scoped memory for decoder_forward.1']
    %16 = vsyncpa [#allocation4], 0
    %17 = vsyncpa [#allocation7], 0
    %18 = vsyncpa [#allocation10], 0
    %s19 = scalar_lea.sflag [#allocation10], 1
    %20 = vsyncpa %s19, 0
    %21 = vsyncpa [#allocation5], 0
    %s22 = scalar_lea.sflag [#allocation5], 1
    %23 = vsyncpa %s22, 0
    %24 = vsyncpa [#allocation13], 0
    loop: start=0, step=1, limit=4
    $region2: #{decoder_forward.1} parent=1 // loop_pre_header
      _
    $region3: #{decoder_forward.1} parent=1 // loop_header
      %s26 = sphi 0, %s30
      %p27 = scmp.ge.s32.totalorder %s26, 4
      %s34 = sphi 0, %s34
      %s36 = sphi 0, %s34
      %s37 = sphi 0, %s36
      %s51 = sphi 0, %s37
      %s55 = sphi 0, %s55
      %s57 = sphi 0, %s55
      %s58 = sphi 0, %s57
      %s72 = sphi 0, %s58
      %s76 = sphi 0, %s76
      %s78 = sphi 0, %s76
      %s79 = sphi 0, %s78
      %s93 = sphi 0, %s79
      %s97 = sphi 0, %s97
      %s99 = sphi 0, %s97
      %s100 = sphi 0, %s99
      %s114 = sphi 0, %s100
      %s118 = sphi 0, %s118
      %s120 = sphi 0, %s118
      %s121 = sphi 0, %s120
      %s135 = sphi 0, %s121
      %s139 = sphi 0, %s139
      %s141 = sphi 0, %s139
      %s142 = sphi 0, %s141
      %s156 = sphi 0, %s142
      %s160 = sphi 0, %s160
      %s162 = sphi 0, %s160
      %s163 = sphi 0, %s162
      %s177 = sphi 0, %s163
      %s183 = sphi 0, %s185
      %s186 = sphi 0, %s183
      %s187 = sphi 0, %s186
      %s203 = sphi 0, %s187
      %s209 = sphi 0, %s211
      %s212 = sphi 0, %s209
      %s213 = sphi 0, %s212
      %s229 = sphi 0, %s213
      %s235 = sphi 0, %s237
      %s238 = sphi 0, %s235
      %s239 = sphi 0, %s238
      %s255 = sphi 0, %s239
      %s259 = sphi 0, %s259
      %s261 = sphi 0, %s259
      %s262 = sphi 0, %s261
      %s276 = sphi 0, %s262
    $region4: #{decoder_forward.1} parent=1 // loop_header_branch
      %29 = sbr.rel (%p27) target = $region8
    $region5: #{decoder_forward.1} parent=1 // loop_body
      %s31 = ssub.s32 %s26, 1
      %s32 = ssub.s32 %s26, 2
      %s33 = sadd.s32 %s26, 1
      %s35 = sadd.s32 %s34, 1
      %p38 = scmp.eq.s32.totalorder %s26, 1
      %p39 = scmp.ne.s32.totalorder %s34, %s36
      %p40 = scmp.eq.s32.totalorder %s26, 0
      %p41 = por %p39, %p40
      %p42 = scmp.ne.s32.totalorder %s34, %s36
      %p43 = scmp.eq.s32.totalorder %s31, 1
      %p44 = por %p42, %p43
      %p45 = scmp.ne.s32.totalorder %s36, %s37
      %p46 = scmp.eq.s32.totalorder %s31, 0
      %p47 = por %p45, %p46
      %p48 = scmp.ne.s32.totalorder %s36, %s37
      %p49 = scmp.eq.s32.totalorder %s32, 1
      %p50 = por %p48, %p49
      %p52 = scmp.ne.s32.totalorder %s37, %s51
      %p53 = scmp.eq.s32.totalorder %s32, 0
      %p54 = por %p52, %p53
      %s56 = sadd.s32 %s55, 1
      %p59 = scmp.eq.s32.totalorder %s26, 1
      %p60 = scmp.ne.s32.totalorder %s55, %s57
      %p61 = scmp.eq.s32.totalorder %s26, 0
      %p62 = por %p60, %p61
      %p63 = scmp.ne.s32.totalorder %s55, %s57
      %p64 = scmp.eq.s32.totalorder %s31, 1
      %p65 = por %p63, %p64
      %p66 = scmp.ne.s32.totalorder %s57, %s58
      %p67 = scmp.eq.s32.totalorder %s31, 0
      %p68 = por %p66, %p67
      %p69 = scmp.ne.s32.totalorder %s57, %s58
      %p70 = scmp.eq.s32.totalorder %s32, 1
      %p71 = por %p69, %p70
      %p73 = scmp.ne.s32.totalorder %s58, %s72
      %p74 = scmp.eq.s32.totalorder %s32, 0
      %p75 = por %p73, %p74
      %s77 = sadd.s32 %s76, 1
      %p80 = scmp.eq.s32.totalorder %s26, 1
      %p81 = scmp.ne.s32.totalorder %s76, %s78
      %p82 = scmp.eq.s32.totalorder %s26, 0
      %p83 = por %p81, %p82
      %p84 = scmp.ne.s32.totalorder %s76, %s78
      %p85 = scmp.eq.s32.totalorder %s31, 1
      %p86 = por %p84, %p85
      %p87 = scmp.ne.s32.totalorder %s78, %s79
      %p88 = scmp.eq.s32.totalorder %s31, 0
      %p89 = por %p87, %p88
      %p90 = scmp.ne.s32.totalorder %s78, %s79
      %p91 = scmp.eq.s32.totalorder %s32, 1
      %p92 = por %p90, %p91
      %p94 = scmp.ne.s32.totalorder %s79, %s93
      %p95 = scmp.eq.s32.totalorder %s32, 0
      %p96 = por %p94, %p95
      %s98 = sadd.s32 %s97, 1
      %p101 = scmp.eq.s32.totalorder %s26, 1
      %p102 = scmp.ne.s32.totalorder %s97, %s99
      %p103 = scmp.eq.s32.totalorder %s26, 0
      %p104 = por %p102, %p103
      %p105 = scmp.ne.s32.totalorder %s97, %s99
      %p106 = scmp.eq.s32.totalorder %s31, 1
      %p107 = por %p105, %p106
      %p108 = scmp.ne.s32.totalorder %s99, %s100
      %p109 = scmp.eq.s32.totalorder %s31, 0
      %p110 = por %p108, %p109
      %p111 = scmp.ne.s32.totalorder %s99, %s100
      %p112 = scmp.eq.s32.totalorder %s32, 1
      %p113 = por %p111, %p112
      %p115 = scmp.ne.s32.totalorder %s100, %s114
      %p116 = scmp.eq.s32.totalorder %s32, 0
      %p117 = por %p115, %p116
      %s119 = sadd.s32 %s118, 1
      %p122 = scmp.eq.s32.totalorder %s26, 1
      %p123 = scmp.ne.s32.totalorder %s118, %s120
      %p124 = scmp.eq.s32.totalorder %s26, 0
      %p125 = por %p123, %p124
      %p126 = scmp.ne.s32.totalorder %s118, %s120
      %p127 = scmp.eq.s32.totalorder %s31, 1
      %p128 = por %p126, %p127
      %p129 = scmp.ne.s32.totalorder %s120, %s121
      %p130 = scmp.eq.s32.totalorder %s31, 0
      %p131 = por %p129, %p130
      %p132 = scmp.ne.s32.totalorder %s120, %s121
      %p133 = scmp.eq.s32.totalorder %s32, 1
      %p134 = por %p132, %p133
      %p136 = scmp.ne.s32.totalorder %s121, %s135
      %p137 = scmp.eq.s32.totalorder %s32, 0
      %p138 = por %p136, %p137
      %s140 = sadd.s32 %s139, 1
      %p143 = scmp.eq.s32.totalorder %s26, 1
      %p144 = scmp.ne.s32.totalorder %s139, %s141
      %p145 = scmp.eq.s32.totalorder %s26, 0
      %p146 = por %p144, %p145
      %p147 = scmp.ne.s32.totalorder %s139, %s141
      %p148 = scmp.eq.s32.totalorder %s31, 1
      %p149 = por %p147, %p148
      %p150 = scmp.ne.s32.totalorder %s141, %s142
      %p151 = scmp.eq.s32.totalorder %s31, 0
      %p152 = por %p150, %p151
      %p153 = scmp.ne.s32.totalorder %s141, %s142
      %p154 = scmp.eq.s32.totalorder %s32, 1
      %p155 = por %p153, %p154
      %p157 = scmp.ne.s32.totalorder %s142, %s156
      %p158 = scmp.eq.s32.totalorder %s32, 0
      %p159 = por %p157, %p158
      %s161 = sadd.s32 %s160, 1
      %p164 = scmp.eq.s32.totalorder %s26, 1
      %p165 = scmp.ne.s32.totalorder %s160, %s162
      %p166 = scmp.eq.s32.totalorder %s26, 0
      %p167 = por %p165, %p166
      %p168 = scmp.ne.s32.totalorder %s160, %s162
      %p169 = scmp.eq.s32.totalorder %s31, 1
      %p170 = por %p168, %p169
      %p171 = scmp.ne.s32.totalorder %s162, %s163
      %p172 = scmp.eq.s32.totalorder %s31, 0
      %p173 = por %p171, %p172
      %p174 = scmp.ne.s32.totalorder %s162, %s163
      %p175 = scmp.eq.s32.totalorder %s32, 1
      %p176 = por %p174, %p175
      %p178 = scmp.ne.s32.totalorder %s163, %s177
      %p179 = scmp.eq.s32.totalorder %s32, 0
      %p180 = por %p178, %p179
      %s181 = ssub.s32 %s26, %s33
      %p182 = scmp.eq.s32.totalorder %s181, 0
      %s184 = sadd.s32 %s183, 1
      %s185 = scalar_select %p182, %s183, %s184
      %p188 = pneg %p182
      %p189 = scmp.eq.s32.totalorder %s26, 1
      %p190 = por %p188, %p189
      %p191 = scmp.ne.s32.totalorder %s183, %s186
      %p192 = scmp.eq.s32.totalorder %s26, 0
      %p193 = por %p191, %p192
      %p194 = scmp.ne.s32.totalorder %s183, %s186
      %p195 = scmp.eq.s32.totalorder %s31, 1
      %p196 = por %p194, %p195
      %p197 = scmp.ne.s32.totalorder %s186, %s187
      %p198 = scmp.eq.s32.totalorder %s31, 0
      %p199 = por %p197, %p198
      %p200 = scmp.ne.s32.totalorder %s186, %s187
      %p201 = scmp.eq.s32.totalorder %s32, 1
      %p202 = por %p200, %p201
      %p204 = scmp.ne.s32.totalorder %s187, %s203
      %p205 = scmp.eq.s32.totalorder %s32, 0
      %p206 = por %p204, %p205
      %s207 = ssub.s32 %s26, %s33
      %p208 = scmp.eq.s32.totalorder %s207, 0
      %s210 = sadd.s32 %s209, 1
      %s211 = scalar_select %p208, %s209, %s210
      %p214 = pneg %p208
      %p215 = scmp.eq.s32.totalorder %s26, 1
      %p216 = por %p214, %p215
      %p217 = scmp.ne.s32.totalorder %s209, %s212
      %p218 = scmp.eq.s32.totalorder %s26, 0
      %p219 = por %p217, %p218
      %p220 = scmp.ne.s32.totalorder %s209, %s212
      %p221 = scmp.eq.s32.totalorder %s31, 1
      %p222 = por %p220, %p221
      %p223 = scmp.ne.s32.totalorder %s212, %s213
      %p224 = scmp.eq.s32.totalorder %s31, 0
      %p225 = por %p223, %p224
      %p226 = scmp.ne.s32.totalorder %s212, %s213
      %p227 = scmp.eq.s32.totalorder %s32, 1
      %p228 = por %p226, %p227
      %p230 = scmp.ne.s32.totalorder %s213, %s229
      %p231 = scmp.eq.s32.totalorder %s32, 0
      %p232 = por %p230, %p231
      %s233 = ssub.s32 %s26, %s33
      %p234 = scmp.eq.s32.totalorder %s233, 0
      %s236 = sadd.s32 %s235, 1
      %s237 = scalar_select %p234, %s235, %s236
      %p240 = pneg %p234
      %p241 = scmp.eq.s32.totalorder %s26, 1
      %p242 = por %p240, %p241
      %p243 = scmp.ne.s32.totalorder %s235, %s238
      %p244 = scmp.eq.s32.totalorder %s26, 0
      %p245 = por %p243, %p244
      %p246 = scmp.ne.s32.totalorder %s235, %s238
      %p247 = scmp.eq.s32.totalorder %s31, 1
      %p248 = por %p246, %p247
      %p249 = scmp.ne.s32.totalorder %s238, %s239
      %p250 = scmp.eq.s32.totalorder %s31, 0
      %p251 = por %p249, %p250
      %p252 = scmp.ne.s32.totalorder %s238, %s239
      %p253 = scmp.eq.s32.totalorder %s32, 1
      %p254 = por %p252, %p253
      %p256 = scmp.ne.s32.totalorder %s239, %s255
      %p257 = scmp.eq.s32.totalorder %s32, 0
      %p258 = por %p256, %p257
      %s260 = sadd.s32 %s259, 1
      %p263 = scmp.eq.s32.totalorder %s26, 1
      %p264 = scmp.ne.s32.totalorder %s259, %s261
      %p265 = scmp.eq.s32.totalorder %s26, 0
      %p266 = por %p264, %p265
      %p267 = scmp.ne.s32.totalorder %s259, %s261
      %p268 = scmp.eq.s32.totalorder %s31, 1
      %p269 = por %p267, %p268
      %p270 = scmp.ne.s32.totalorder %s261, %s262
      %p271 = scmp.eq.s32.totalorder %s31, 0
      %p272 = por %p270, %p271
      %p273 = scmp.ne.s32.totalorder %s261, %s262
      %p274 = scmp.eq.s32.totalorder %s32, 1
      %p275 = por %p273, %p274
      %p277 = scmp.ne.s32.totalorder %s262, %s276
      %p278 = scmp.eq.s32.totalorder %s32, 0
      %p279 = por %p277, %p278
      %p280 = scmp.le.s32.totalorder 1, %s26
      %p281 = scmp.lt.s32.totalorder %s26, 3
      %p282 = pnand %p280, %p281
      %p283 = pneg %p282
      // Predicated region
      $region9: #{decoder_forward.1} parent=5 // pred_check
        _
      $region10: #{decoder_forward.1} parent=5 // pred_check_branch
        %285 = sbr.rel (%p282) target = $region12
      $region11: #{decoder_forward.1} parent=5 // pred_region
        %s286 = ssub.s32 %s26, 1
        // Predicated region
        $region13: #{decoder_forward.1} parent=11 // pred_check
          %p287 = pneg %p47
        $region14: #{decoder_forward.1} parent=11 // pred_check_branch
          %289 = sbr.rel (%p287) target = $region16
        $region15: #{decoder_forward.1} parent=11 // pred_region
          _
        $region16: #{decoder_forward.1} parent=11 // pred_fallthru
          _
        // Predicated region
        $region17: #{decoder_forward.1} parent=11 // pred_check
          %p290 = pneg %p68
        $region18: #{decoder_forward.1} parent=11 // pred_check_branch
          %292 = sbr.rel (%p290) target = $region20
        $region19: #{decoder_forward.1} parent=11 // pred_region
          %294 = vsyncadd [#allocation4], 0
          %s295 = sshll.u32 %s1, 4
          %s296 = int_to_ptr.hbm [resolvable:$true] %s295
          %s297 = sshll.u32 [#allocation3], 4
          %s298 = int_to_ptr.vmem [resolvable:$true] %s297
          %303 = dma.hbm_to_vmem [thread:$0]  %s296, 256, %s298, [#allocation4], 128, 128, 8
        $region20: #{decoder_forward.1} parent=11 // pred_fallthru
          _
        // Predicated region
        $region21: #{decoder_forward.1} parent=11 // pred_check
          %p304 = pneg %p89
        $region22: #{decoder_forward.1} parent=11 // pred_check_branch
          %306 = sbr.rel (%p304) target = $region24
        $region23: #{decoder_forward.1} parent=11 // pred_region
          %308 = vsyncadd [#allocation7], 0
          %s309 = sshll.u32 %s2, 4
          %s310 = int_to_ptr.hbm [resolvable:$true] %s309
          %s311 = sshll.u32 [#allocation6], 4
          %s312 = int_to_ptr.vmem [resolvable:$true] %s311
          %317 = dma.hbm_to_vmem [thread:$0]  %s310, 6144, %s312, [#allocation7], 192, 192, 12
        $region24: #{decoder_forward.1} parent=11 // pred_fallthru
          _
        // Predicated region
        $region25: #{decoder_forward.1} parent=11 // pred_check
          %p318 = pneg %p110
        $region26: #{decoder_forward.1} parent=11 // pred_check_branch
          %320 = sbr.rel (%p318) target = $region28
        $region27: #{decoder_forward.1} parent=11 // pred_region
          %322 = vsyncadd [#allocation7], 0
          %s323 = sshll.u32 %s3, 4
          %s324 = int_to_ptr.hbm [resolvable:$true] %s323
          %s325 = sshll.u32 [#allocation8], 4
          %s326 = int_to_ptr.vmem [resolvable:$true] %s325
          %331 = dma.hbm_to_vmem [thread:$0]  %s324, 6144, %s326, [#allocation7], 192, 192, 12
        $region28: #{decoder_forward.1} parent=11 // pred_fallthru
          _
        // Predicated region
        $region29: #{decoder_forward.1} parent=11 // pred_check
          %p332 = pneg %p131
        $region30: #{decoder_forward.1} parent=11 // pred_check_branch
          %334 = sbr.rel (%p332) target = $region32
        $region31: #{decoder_forward.1} parent=11 // pred_region
          _
        $region32: #{decoder_forward.1} parent=11 // pred_fallthru
          _
        // Predicated region
        $region33: #{decoder_forward.1} parent=11 // pred_check
          %p335 = pneg %p152
        $region34: #{decoder_forward.1} parent=11 // pred_check_branch
          %337 = sbr.rel (%p335) target = $region36
        $region35: #{decoder_forward.1} parent=11 // pred_region
          _
        $region36: #{decoder_forward.1} parent=11 // pred_fallthru
          _
        // Predicated region
        $region37: #{decoder_forward.1} parent=11 // pred_check
          %p338 = pneg %p173
        $region38: #{decoder_forward.1} parent=11 // pred_check_branch
          %340 = sbr.rel (%p338) target = $region40
        $region39: #{decoder_forward.1} parent=11 // pred_region
          _
        $region40: #{decoder_forward.1} parent=11 // pred_fallthru
          _
      $region12: #{decoder_forward.1} parent=5 // pred_fallthru
        _
      %p341 = scmp.lt.s32.totalorder %s26, 2
      // Predicated region
      $region41: #{decoder_forward.1} parent=5 // pred_check
        %p342 = pneg %p341
      $region42: #{decoder_forward.1} parent=5 // pred_check_branch
        %344 = sbr.rel (%p342) target = $region44
      $region43: #{decoder_forward.1} parent=5 // pred_region
        // Predicated region
        $region45: #{decoder_forward.1} parent=43 // pred_check
          %p345 = pneg %p193
        $region46: #{decoder_forward.1} parent=43 // pred_check_branch
          %347 = sbr.rel (%p345) target = $region48
        $region47: #{decoder_forward.1} parent=43 // pred_region
          %s348 = sand.u32 %s183, 1
          %s349 = scalar_lea.sflag [#allocation10], %s348
          %s350 = sand.u32 %s183, 1
          %s351 = smul.addr %s350, 64
          %s352 = scalar_lea.vmem [#allocation9], %s351
          %354 = vsyncadd %s349, 0
          %s355 = smul.addr %s26, 4
          %s356 = scalar_lea.hbm %s7, %s355
          %s357 = sshll.u32 %s356, 4
          %s358 = int_to_ptr.hbm [resolvable:$true] %s357
          %s359 = sshll.u32 %s352, 4
          %s360 = int_to_ptr.vmem [resolvable:$true] %s359
          %365 = dma.hbm_to_vmem [thread:$0]  %s358, 1024, %s360, %s349, 128, 64, 4
        $region48: #{decoder_forward.1} parent=43 // pred_fallthru
          _
        // Predicated region
        $region49: #{decoder_forward.1} parent=43 // pred_check
          %p366 = pneg %p219
        $region50: #{decoder_forward.1} parent=43 // pred_check_branch
          %368 = sbr.rel (%p366) target = $region52
        $region51: #{decoder_forward.1} parent=43 // pred_region
          %p369 = scmp.lt.s32.totalorder %s26, 1
          %s370 = scalar_select %p369, %s26, 1
          %s371 = scalar_lea.vmem %s8, %s370
        $region52: #{decoder_forward.1} parent=43 // pred_fallthru
          _
      $region44: #{decoder_forward.1} parent=5 // pred_fallthru
        _
      %p372 = scmp.le.s32.totalorder 1, %s26
      %p373 = scmp.lt.s32.totalorder %s26, 3
      %p374 = pnand %p372, %p373
      %p375 = pneg %p374
      // Predicated region
      $region53: #{decoder_forward.1} parent=5 // pred_check
        _
      $region54: #{decoder_forward.1} parent=5 // pred_check_branch
        %377 = sbr.rel (%p374) target = $region56
      $region55: #{decoder_forward.1} parent=5 // pred_region
        %s378 = ssub.s32 %s26, 1
        // Predicated region
        $region57: #{decoder_forward.1} parent=55 // pred_check
          %p379 = pneg %p68
        $region58: #{decoder_forward.1} parent=55 // pred_check_branch
          %381 = sbr.rel (%p379) target = $region60
        $region59: #{decoder_forward.1} parent=55 // pred_region
          %383 = dma.done [#allocation4], 256
        $region60: #{decoder_forward.1} parent=55 // pred_fallthru
          _
        // Predicated region
        $region61: #{decoder_forward.1} parent=55 // pred_check
          %p384 = pneg %p89
        $region62: #{decoder_forward.1} parent=55 // pred_check_branch
          %386 = sbr.rel (%p384) target = $region64
        $region63: #{decoder_forward.1} parent=55 // pred_region
          %388 = dma.done [#allocation7], 6144
        $region64: #{decoder_forward.1} parent=55 // pred_fallthru
          _
        // Predicated region
        $region65: #{decoder_forward.1} parent=55 // pred_check
          %p389 = pneg %p110
        $region66: #{decoder_forward.1} parent=55 // pred_check_branch
          %391 = sbr.rel (%p389) target = $region68
        $region67: #{decoder_forward.1} parent=55 // pred_region
          %393 = dma.done [#allocation7], 6144
        $region68: #{decoder_forward.1} parent=55 // pred_fallthru
          _
        %s394 = sand.u32 %s186, 1
        %s395 = scalar_lea.sflag [#allocation10], %s394
        %s396 = sand.u32 %s186, 1
        %s397 = smul.addr %s396, 64
        %s398 = scalar_lea.vmem [#allocation9], %s397
        // Predicated region
        $region69: #{decoder_forward.1} parent=55 // pred_check
          %p399 = pneg %p199
        $region70: #{decoder_forward.1} parent=55 // pred_check_branch
          %401 = sbr.rel (%p399) target = $region72
        $region71: #{decoder_forward.1} parent=55 // pred_region
          %403 = dma.done %s395, 1024
        $region72: #{decoder_forward.1} parent=55 // pred_fallthru
          _
        %p404 = pneg %p47
        %p405 = pneg %p44
        %p406 = pneg %p68
        %p407 = pneg %p65
        %p408 = pneg %p89
        %p409 = pneg %p86
        %p410 = pneg %p110
        %p411 = pneg %p107
        %p412 = pneg %p131
        %p413 = pneg %p128
        %p414 = pneg %p152
        %p415 = pneg %p149
        %p416 = pneg %p173
        %p417 = pneg %p170
        %s418 = sand.u32 %s186, 1
        %s419 = scalar_lea.sflag [#allocation10], %s418
        %s420 = sand.u32 %s186, 1
        %s421 = smul.addr %s420, 64
        %s422 = scalar_lea.vmem [#allocation9], %s421
        %p423 = pneg %p199
        %p424 = pneg %p196
        %p425 = scmp.lt.s32.totalorder %s31, 1
        %s426 = scalar_select %p425, %s31, 1
        %s427 = scalar_lea.vmem %s8, %s426
        %p428 = pneg %p225
        %p429 = pneg %p222
        %p430 = pneg %p251
        %p431 = pneg %p248
        %s432 = sand.u32 %s238, 1
        %s433 = scalar_lea.sflag [#allocation5], %s432
        %s434 = sand.u32 %s238, 1
        %s435 = smul.addr %s434, 8
        %s436 = scalar_lea.vmem [#allocation11], %s435
        %p437 = pneg %p272
        %p438 = pneg %p269
        %p439 = scmp.lt.s32.totalorder %s31, 1
        %s440 = scalar_select %p439, %s31, 1
        %s441 = scalar_lea.vmem %s8, %s440
        %p442 = scmp.eq.s32.totalorder %s31, 0
        // Predicated region
        $region73: #{decoder_forward.1} parent=55 // pred_check
          %p443 = pneg %p442
        $region74: #{decoder_forward.1} parent=55 // pred_check_branch
          %445 = sbr.rel (%p443) target = $region76
        $region75: #{decoder_forward.1} parent=55 // pred_region
          %v446 = vld [vmem:[%s0] sm:$0xf]
          %v447 = vld [vmem:[#allocation3] sm:$0xff]
          %v448 = vld [vmem:[#allocation6] sm:$0xff]
          %v449 = vld [vmem:[#allocation6 + $0x8] sm:$0xf]
          %v450 = vld [vmem:[#allocation6 + $0xc] sm:$0xff]
          %v451 = vld [vmem:[#allocation6 + $0x14] sm:$0xf]
          %v452 = vld [vmem:[#allocation6 + $0x18] sm:$0xff]
          %v453 = vld [vmem:[#allocation6 + $0x20] sm:$0xf]
          %v454 = vld [vmem:[#allocation6 + $0x24] sm:$0xff]
          %v455 = vld [vmem:[#allocation6 + $0x2c] sm:$0xf]
          %v456 = vld [vmem:[#allocation6 + $0x30] sm:$0xff]
          %v457 = vld [vmem:[#allocation6 + $0x38] sm:$0xf]
          %v458 = vld [vmem:[#allocation6 + $0x3c] sm:$0xff]
          %v459 = vld [vmem:[#allocation6 + $0x44] sm:$0xf]
          %v460 = vld [vmem:[#allocation6 + $0x48] sm:$0xff]
          %v461 = vld [vmem:[#allocation6 + $0x50] sm:$0xf]
          %v462 = vld [vmem:[#allocation6 + $0x54] sm:$0xff]
          %v463 = vld [vmem:[#allocation6 + $0x5c] sm:$0xf]
          %v464 = vld [vmem:[#allocation6 + $0x60] sm:$0xff]
          %v465 = vld [vmem:[#allocation6 + $0x68] sm:$0xf]
          %v466 = vld [vmem:[#allocation6 + $0x6c] sm:$0xff]
          %v467 = vld [vmem:[#allocation6 + $0x74] sm:$0xf]
          %v468 = vld [vmem:[#allocation6 + $0x78] sm:$0xff]
          %v469 = vld [vmem:[#allocation6 + $0x80] sm:$0xf]
          %v470 = vld [vmem:[#allocation6 + $0x84] sm:$0xff]
          %v471 = vld [vmem:[#allocation6 + $0x8c] sm:$0xf]
          %v472 = vld [vmem:[#allocation6 + $0x90] sm:$0xff]
          %v473 = vld [vmem:[#allocation6 + $0x98] sm:$0xf]
          %v474 = vld [vmem:[#allocation6 + $0x9c] sm:$0xff]
          %v475 = vld [vmem:[#allocation6 + $0xa4] sm:$0xf]
          %v476 = vld [vmem:[#allocation6 + $0xa8] sm:$0xff]
          %v477 = vld [vmem:[#allocation6 + $0xb0] sm:$0xf]
          %v478 = vld [vmem:[#allocation6 + $0xb4] sm:$0xff]
          %v479 = vld [vmem:[#allocation6 + $0xbc] sm:$0xf]
          %v512 = vunpack.c.l.b16 %v448
          %v513 = vunpack.c.h.b16 %v448
          %v514 = vunpack.c.l.b16 %v449
          %v515 = vunpack.c.l.b16 %v450
          %v516 = vunpack.c.h.b16 %v450
          %v517 = vunpack.c.l.b16 %v451
          %v518 = vunpack.c.l.b16 %v452
          %v519 = vunpack.c.h.b16 %v452
          %v520 = vunpack.c.l.b16 %v453
          %v521 = vunpack.c.l.b16 %v454
          %v522 = vunpack.c.h.b16 %v454
          %v523 = vunpack.c.l.b16 %v455
          %v524 = vunpack.c.l.b16 %v456
          %v525 = vunpack.c.h.b16 %v456
          %v526 = vunpack.c.l.b16 %v457
          %v527 = vunpack.c.l.b16 %v458
          %v528 = vunpack.c.h.b16 %v458
          %v529 = vunpack.c.l.b16 %v459
          %v530 = vunpack.c.l.b16 %v460
          %v531 = vunpack.c.h.b16 %v460
          %v532 = vunpack.c.l.b16 %v461
          %v533 = vunpack.c.l.b16 %v462
          %v534 = vunpack.c.h.b16 %v462
          %v535 = vunpack.c.l.b16 %v463
          %v536 = vunpack.c.l.b16 %v464
          %v537 = vunpack.c.h.b16 %v464
          %v538 = vunpack.c.l.b16 %v465
          %v539 = vunpack.c.l.b16 %v466
          %v540 = vunpack.c.h.b16 %v466
          %v541 = vunpack.c.l.b16 %v467
          %v542 = vunpack.c.l.b16 %v468
          %v543 = vunpack.c.h.b16 %v468
          %v544 = vunpack.c.l.b16 %v469
          %v545 = vunpack.c.l.b16 %v470
          %v546 = vunpack.c.h.b16 %v470
          %v547 = vunpack.c.l.b16 %v471
          %v548 = vunpack.c.l.b16 %v472
          %v549 = vunpack.c.h.b16 %v472
          %v550 = vunpack.c.l.b16 %v473
          %v551 = vunpack.c.l.b16 %v474
          %v552 = vunpack.c.h.b16 %v474
          %v553 = vunpack.c.l.b16 %v475
          %v554 = vunpack.c.l.b16 %v476
          %v555 = vunpack.c.h.b16 %v476
          %v556 = vunpack.c.l.b16 %v477
          %v557 = vunpack.c.l.b16 %v478
          %v558 = vunpack.c.h.b16 %v478
          %v559 = vunpack.c.l.b16 %v479
          %v560 = vpack.c.b16 %v515, %v512
          %v561 = vpack.c.b16 %v516, %v513
          %v562 = vpack.c.b16 %v517, %v514
          %v563 = vpack.c.b16 %v521, %v518
          %v564 = vpack.c.b16 %v522, %v519
          %v565 = vpack.c.b16 %v523, %v520
          %v566 = vpack.c.b16 %v527, %v524
          %v567 = vpack.c.b16 %v528, %v525
          %v568 = vpack.c.b16 %v529, %v526
          %v569 = vpack.c.b16 %v533, %v530
          %v570 = vpack.c.b16 %v534, %v531
          %v571 = vpack.c.b16 %v535, %v532
          %v572 = vpack.c.b16 %v539, %v536
          %v573 = vpack.c.b16 %v540, %v537
          %v574 = vpack.c.b16 %v541, %v538
          %v575 = vpack.c.b16 %v545, %v542
          %v576 = vpack.c.b16 %v546, %v543
          %v577 = vpack.c.b16 %v547, %v544
          %v578 = vpack.c.b16 %v551, %v548
          %v579 = vpack.c.b16 %v552, %v549
          %v580 = vpack.c.b16 %v553, %v550
          %v581 = vpack.c.b16 %v557, %v554
          %v582 = vpack.c.b16 %v558, %v555
          %v583 = vpack.c.b16 %v559, %v556
          %608 = vmatpush.bf16.msra.mxu0 %v581
          %609 = vmatpush.bf16.msra.mxu0 %v578
          %610 = vmatpush.bf16.msra.mxu0 %v575
          %611 = vmatpush.bf16.msra.mxu0 %v572
          %612 = vmatpush.bf16.msra.mxu0 %v569
          %613 = vmatpush.bf16.msra.mxu0 %v566
          %614 = vmatpush.bf16.msra.mxu0 %v563
          %615 = vmatpush.bf16.msra.mxu0 %v560
          %616 = vmatmul.bf16.gmra.mxu0 %v446
          %v617 = vpop.f32.mrf.mxu0
          %v618 = vadd.f32 0.0, %v617
          %v619 = vpop.f32.mrf.mxu0
          %620 = vdwg.mxu0
          %621 = vmatpush.bf16.msra.mxu0 %v582
          %622 = vmatpush.bf16.msra.mxu0 %v579
          %623 = vmatpush.bf16.msra.mxu0 %v576
          %624 = vmatpush.bf16.msra.mxu0 %v573
          %625 = vmatpush.bf16.msra.mxu0 %v570
          %626 = vmatpush.bf16.msra.mxu0 %v567
          %627 = vmatpush.bf16.msra.mxu0 %v564
          %628 = vmatpush.bf16.msra.mxu0 %v561
          %629 = vmatmul.bf16.gmra.mxu0 %v446
          %v630 = vpop.f32.mrf.mxu0
          %v631 = vadd.f32 0.0, %v630
          %v632 = vpop.f32.mrf.mxu0
          %633 = vdwg.mxu0
          %634 = vmatpush.bf16.msra.mxu0 %v583
          %635 = vmatpush.bf16.msra.mxu0 %v580
          %636 = vmatpush.bf16.msra.mxu0 %v577
          %637 = vmatpush.bf16.msra.mxu0 %v574
          %638 = vmatpush.bf16.msra.mxu0 %v571
          %639 = vmatpush.bf16.msra.mxu0 %v568
          %640 = vmatpush.bf16.msra.mxu0 %v565
          %641 = vmatpush.bf16.msra.mxu0 %v562
          %642 = vmatmul.bf16.gmra.mxu0 %v446
          %v643 = vpop.f32.mrf.mxu0
          %v644 = vadd.f32 0.0, %v643
          %v645 = vpop.f32.mrf.mxu0
          %646 = vdwg.mxu0
          %v647 = vpack.c.bf16 %v447, %v447
          %v648 = vld [vmem:[#allocation8] sm:$0xff]
          %v649 = vld [vmem:[#allocation8 + $0x8] sm:$0xf]
          %v650 = vld [vmem:[#allocation8 + $0xc] sm:$0xff]
          %v651 = vld [vmem:[#allocation8 + $0x14] sm:$0xf]
          %v652 = vld [vmem:[#allocation8 + $0x18] sm:$0xff]
          %v653 = vld [vmem:[#allocation8 + $0x20] sm:$0xf]
          %v654 = vld [vmem:[#allocation8 + $0x24] sm:$0xff]
          %v655 = vld [vmem:[#allocation8 + $0x2c] sm:$0xf]
          %v656 = vld [vmem:[#allocation8 + $0x30] sm:$0xff]
          %v657 = vld [vmem:[#allocation8 + $0x38] sm:$0xf]
          %v658 = vld [vmem:[#allocation8 + $0x3c] sm:$0xff]
          %v659 = vld [vmem:[#allocation8 + $0x44] sm:$0xf]
          %v660 = vld [vmem:[#allocation8 + $0x48] sm:$0xff]
          %v661 = vld [vmem:[#allocation8 + $0x50] sm:$0xf]
          %v662 = vld [vmem:[#allocation8 + $0x54] sm:$0xff]
          %v663 = vld [vmem:[#allocation8 + $0x5c] sm:$0xf]
          %v664 = vld [vmem:[#allocation8 + $0x60] sm:$0xff]
          %v665 = vld [vmem:[#allocation8 + $0x68] sm:$0xf]
          %v666 = vld [vmem:[#allocation8 + $0x6c] sm:$0xff]
          %v667 = vld [vmem:[#allocation8 + $0x74] sm:$0xf]
          %v668 = vld [vmem:[#allocation8 + $0x78] sm:$0xff]
          %v669 = vld [vmem:[#allocation8 + $0x80] sm:$0xf]
          %v670 = vld [vmem:[#allocation8 + $0x84] sm:$0xff]
          %v671 = vld [vmem:[#allocation8 + $0x8c] sm:$0xf]
          %v672 = vld [vmem:[#allocation8 + $0x90] sm:$0xff]
          %v673 = vld [vmem:[#allocation8 + $0x98] sm:$0xf]
          %v674 = vld [vmem:[#allocation8 + $0x9c] sm:$0xff]
          %v675 = vld [vmem:[#allocation8 + $0xa4] sm:$0xf]
          %v676 = vld [vmem:[#allocation8 + $0xa8] sm:$0xff]
          %v677 = vld [vmem:[#allocation8 + $0xb0] sm:$0xf]
          %v678 = vld [vmem:[#allocation8 + $0xb4] sm:$0xff]
          %v679 = vld [vmem:[#allocation8 + $0xbc] sm:$0xf]
          %v712 = vunpack.c.l.b16 %v648
          %v713 = vunpack.c.h.b16 %v648
          %v714 = vunpack.c.l.b16 %v649
          %v715 = vunpack.c.l.b16 %v650
          %v716 = vunpack.c.h.b16 %v650
          %v717 = vunpack.c.l.b16 %v651
          %v718 = vunpack.c.l.b16 %v652
          %v719 = vunpack.c.h.b16 %v652
          %v720 = vunpack.c.l.b16 %v653
          %v721 = vunpack.c.l.b16 %v654
          %v722 = vunpack.c.h.b16 %v654
          %v723 = vunpack.c.l.b16 %v655
          %v724 = vunpack.c.l.b16 %v656
          %v725 = vunpack.c.h.b16 %v656
          %v726 = vunpack.c.l.b16 %v657
          %v727 = vunpack.c.l.b16 %v658
          %v728 = vunpack.c.h.b16 %v658
          %v729 = vunpack.c.l.b16 %v659
          %v730 = vunpack.c.l.b16 %v660
          %v731 = vunpack.c.h.b16 %v660
          %v732 = vunpack.c.l.b16 %v661
          %v733 = vunpack.c.l.b16 %v662
          %v734 = vunpack.c.h.b16 %v662
          %v735 = vunpack.c.l.b16 %v663
          %v736 = vunpack.c.l.b16 %v664
          %v737 = vunpack.c.h.b16 %v664
          %v738 = vunpack.c.l.b16 %v665
          %v739 = vunpack.c.l.b16 %v666
          %v740 = vunpack.c.h.b16 %v666
          %v741 = vunpack.c.l.b16 %v667
          %v742 = vunpack.c.l.b16 %v668
          %v743 = vunpack.c.h.b16 %v668
          %v744 = vunpack.c.l.b16 %v669
          %v745 = vunpack.c.l.b16 %v670
          %v746 = vunpack.c.h.b16 %v670
          %v747 = vunpack.c.l.b16 %v671
          %v748 = vunpack.c.l.b16 %v672
          %v749 = vunpack.c.h.b16 %v672
          %v750 = vunpack.c.l.b16 %v673
          %v751 = vunpack.c.l.b16 %v674
          %v752 = vunpack.c.h.b16 %v674
          %v753 = vunpack.c.l.b16 %v675
          %v754 = vunpack.c.l.b16 %v676
          %v755 = vunpack.c.h.b16 %v676
          %v756 = vunpack.c.l.b16 %v677
          %v757 = vunpack.c.l.b16 %v678
          %v758 = vunpack.c.h.b16 %v678
          %v759 = vunpack.c.l.b16 %v679
          %v760 = vpack.c.b16 %v715, %v712
          %v761 = vpack.c.b16 %v716, %v713
          %v762 = vpack.c.b16 %v717, %v714
          %v763 = vpack.c.b16 %v721, %v718
          %v764 = vpack.c.b16 %v722, %v719
          %v765 = vpack.c.b16 %v723, %v720
          %v766 = vpack.c.b16 %v727, %v724
          %v767 = vpack.c.b16 %v728, %v725
          %v768 = vpack.c.b16 %v729, %v726
          %v769 = vpack.c.b16 %v733, %v730
          %v770 = vpack.c.b16 %v734, %v731
          %v771 = vpack.c.b16 %v735, %v732
          %v772 = vpack.c.b16 %v739, %v736
          %v773 = vpack.c.b16 %v740, %v737
          %v774 = vpack.c.b16 %v741, %v738
          %v775 = vpack.c.b16 %v745, %v742
          %v776 = vpack.c.b16 %v746, %v743
          %v777 = vpack.c.b16 %v747, %v744
          %v778 = vpack.c.b16 %v751, %v748
          %v779 = vpack.c.b16 %v752, %v749
          %v780 = vpack.c.b16 %v753, %v750
          %v781 = vpack.c.b16 %v757, %v754
          %v782 = vpack.c.b16 %v758, %v755
          %v783 = vpack.c.b16 %v759, %v756
          %808 = vmatpush.bf16.msra.mxu0 %v781
          %809 = vmatpush.bf16.msra.mxu0 %v778
          %810 = vmatpush.bf16.msra.mxu0 %v775
          %811 = vmatpush.bf16.msra.mxu0 %v772
          %812 = vmatpush.bf16.msra.mxu0 %v769
          %813 = vmatpush.bf16.msra.mxu0 %v766
          %814 = vmatpush.bf16.msra.mxu0 %v763
          %815 = vmatpush.bf16.msra.mxu0 %v760
          %816 = vmatmul.bf16.gmra.mxu0 %v647
          %v817 = vpop.f32.mrf.mxu0
          %v818 = vadd.f32 0.0, %v817
          %v819 = vpop.f32.mrf.mxu0
          %820 = vdwg.mxu0
          %821 = vmatpush.bf16.msra.mxu0 %v782
          %822 = vmatpush.bf16.msra.mxu0 %v779
          %823 = vmatpush.bf16.msra.mxu0 %v776
          %824 = vmatpush.bf16.msra.mxu0 %v773
          %825 = vmatpush.bf16.msra.mxu0 %v770
          %826 = vmatpush.bf16.msra.mxu0 %v767
          %827 = vmatpush.bf16.msra.mxu0 %v764
          %828 = vmatpush.bf16.msra.mxu0 %v761
          %829 = vmatmul.bf16.gmra.mxu0 %v647
          %v830 = vpop.f32.mrf.mxu0
          %v831 = vadd.f32 0.0, %v830
          %v832 = vpop.f32.mrf.mxu0
          %833 = vdwg.mxu0
          %834 = vmatpush.bf16.msra.mxu0 %v783
          %835 = vmatpush.bf16.msra.mxu0 %v780
          %836 = vmatpush.bf16.msra.mxu0 %v777
          %837 = vmatpush.bf16.msra.mxu0 %v774
          %838 = vmatpush.bf16.msra.mxu0 %v771
          %839 = vmatpush.bf16.msra.mxu0 %v768
          %840 = vmatpush.bf16.msra.mxu0 %v765
          %841 = vmatpush.bf16.msra.mxu0 %v762
          %842 = vmatmul.bf16.gmra.mxu0 %v647
          %v843 = vpop.f32.mrf.mxu0
          %v844 = vadd.f32 0.0, %v843
          %v845 = vpop.f32.mrf.mxu0
          %846 = vdwg.mxu0
          %v847 = vadd.f32 %v618, %v818
          %v848 = vadd.f32 %v631, %v831
          %v849 = vld [vmem:[%s4] sm:$0x3]
          %v851 = vperm.slane %v849, 0
          %v852 = vperm.slane %v849, 1
          %v855 = vadd.f32 %v847, %v851
          %v856 = vadd.f32 %v848, %v852
          %v857 = vxor.u32 %v855, 2147483648
          %v858 = vxor.u32 %v856, 2147483648
          %v859 = vmul.f32 %v857, 1.442695
          %v860 = vpow.pop %v859
          %v861 = vmul.f32 %v858, 1.442695
          %v862 = vpow.pop %v861
          %v863 = vadd.f32 %v860, 1.0
          %v864 = vadd.f32 %v862, 1.0
          %v865 = vrcp.pop %v863
          %v866 = vmul.f32 %v863, %v865
          %v867 = vsub.f32 1.0, %v866
          %v868 = vmul.f32 %v865, %v867
          %v869 = vadd.f32 %v865, %v868
          %vm870 = vweird.f32 %v863
          %vm871 = vweird.f32 %v865
          %vm872 = vmor %vm870, %vm871
          %v873 = vsel %vm872, %v865, %v869
          %v874 = vand.u32 2147483647, %v863
          %vm875 = vcmp.eq.f32.partialorder %v874, 8.507059e+37
          %v876 = vand.u32 %v863, 2147483648
          %v877 = vor.u32 1.1754944e-38, %v876
          %v878 = vsel %vm875, %v877, %v873
          %v879 = vmul.f32 1.0, %v878
          %v880 = vrcp.pop %v864
          %v881 = vmul.f32 %v864, %v880
          %v882 = vsub.f32 1.0, %v881
          %v883 = vmul.f32 %v880, %v882
          %v884 = vadd.f32 %v880, %v883
          %vm885 = vweird.f32 %v864
          %vm886 = vweird.f32 %v880
          %vm887 = vmor %vm885, %vm886
          %v888 = vsel %vm887, %v880, %v884
          %v889 = vand.u32 2147483647, %v864
          %vm890 = vcmp.eq.f32.partialorder %v889, 8.507059e+37
          %v891 = vand.u32 %v864, 2147483648
          %v892 = vor.u32 1.1754944e-38, %v891
          %v893 = vsel %vm890, %v892, %v888
          %v894 = vmul.f32 1.0, %v893
          %v895 = vld [vmem:[%s5] sm:$0x1]
          %v897 = vperm.slane %v895, 0
          %v899 = vadd.f32 %v644, %v897
          %v900 = vld [vmem:[%s6] sm:$0x1]
          %v902 = vperm.slane %v900, 0
          %v904 = vadd.f32 %v844, %v902
          %v905 = vmul.f32 %v879, %v904
          %v906 = vadd.f32 %v899, %v905
          %v907 = vtanh.pop %v906
          %v908 = vsub.f32 1.0, %v894
          %v909 = vmul.f32 %v908, %v907
          %v910 = vmul.f32 %v894, %v447
          %v911 = vadd.f32 %v909, %v910
          %912 = vst [vmem:[#allocation12] sm:$0xff] %v911
          %s913 = scalar_lea.vmem [#allocation3], 8
          %v914 = vld [vmem:[%s913] sm:$0xff]
          %v915 = vpack.c.bf16 %v911, %v911
          %s916 = scalar_lea.vmem [#allocation6], 192
          %v917 = vld [vmem:[%s916] sm:$0xff]
          %v918 = vld [vmem:[%s916 + $0x8] sm:$0xf]
          %v919 = vld [vmem:[%s916 + $0xc] sm:$0xff]
          %v920 = vld [vmem:[%s916 + $0x14] sm:$0xf]
          %v921 = vld [vmem:[%s916 + $0x18] sm:$0xff]
          %v922 = vld [vmem:[%s916 + $0x20] sm:$0xf]
          %v923 = vld [vmem:[%s916 + $0x24] sm:$0xff]
          %v924 = vld [vmem:[%s916 + $0x2c] sm:$0xf]
          %v925 = vld [vmem:[%s916 + $0x30] sm:$0xff]
          %v926 = vld [vmem:[%s916 + $0x38] sm:$0xf]
          %v927 = vld [vmem:[%s916 + $0x3c] sm:$0xff]
          %v928 = vld [vmem:[%s916 + $0x44] sm:$0xf]
          %v929 = vld [vmem:[%s916 + $0x48] sm:$0xff]
          %v930 = vld [vmem:[%s916 + $0x50] sm:$0xf]
          %v931 = vld [vmem:[%s916 + $0x54] sm:$0xff]
          %v932 = vld [vmem:[%s916 + $0x5c] sm:$0xf]
          %v933 = vld [vmem:[%s916 + $0x60] sm:$0xff]
          %v934 = vld [vmem:[%s916 + $0x68] sm:$0xf]
          %v935 = vld [vmem:[%s916 + $0x6c] sm:$0xff]
          %v936 = vld [vmem:[%s916 + $0x74] sm:$0xf]
          %v937 = vld [vmem:[%s916 + $0x78] sm:$0xff]
          %v938 = vld [vmem:[%s916 + $0x80] sm:$0xf]
          %v939 = vld [vmem:[%s916 + $0x84] sm:$0xff]
          %v940 = vld [vmem:[%s916 + $0x8c] sm:$0xf]
          %v941 = vld [vmem:[%s916 + $0x90] sm:$0xff]
          %v942 = vld [vmem:[%s916 + $0x98] sm:$0xf]
          %v943 = vld [vmem:[%s916 + $0x9c] sm:$0xff]
          %v944 = vld [vmem:[%s916 + $0xa4] sm:$0xf]
          %v945 = vld [vmem:[%s916 + $0xa8] sm:$0xff]
          %v946 = vld [vmem:[%s916 + $0xb0] sm:$0xf]
          %v947 = vld [vmem:[%s916 + $0xb4] sm:$0xff]
          %v948 = vld [vmem:[%s916 + $0xbc] sm:$0xf]
          %v981 = vunpack.c.l.b16 %v917
          %v982 = vunpack.c.h.b16 %v917
          %v983 = vunpack.c.l.b16 %v918
          %v984 = vunpack.c.l.b16 %v919
          %v985 = vunpack.c.h.b16 %v919
          %v986 = vunpack.c.l.b16 %v920
          %v987 = vunpack.c.l.b16 %v921
          %v988 = vunpack.c.h.b16 %v921
          %v989 = vunpack.c.l.b16 %v922
          %v990 = vunpack.c.l.b16 %v923
          %v991 = vunpack.c.h.b16 %v923
          %v992 = vunpack.c.l.b16 %v924
          %v993 = vunpack.c.l.b16 %v925
          %v994 = vunpack.c.h.b16 %v925
          %v995 = vunpack.c.l.b16 %v926
          %v996 = vunpack.c.l.b16 %v927
          %v997 = vunpack.c.h.b16 %v927
          %v998 = vunpack.c.l.b16 %v928
          %v999 = vunpack.c.l.b16 %v929
          %v1000 = vunpack.c.h.b16 %v929
          %v1001 = vunpack.c.l.b16 %v930
          %v1002 = vunpack.c.l.b16 %v931
          %v1003 = vunpack.c.h.b16 %v931
          %v1004 = vunpack.c.l.b16 %v932
          %v1005 = vunpack.c.l.b16 %v933
          %v1006 = vunpack.c.h.b16 %v933
          %v1007 = vunpack.c.l.b16 %v934
          %v1008 = vunpack.c.l.b16 %v935
          %v1009 = vunpack.c.h.b16 %v935
          %v1010 = vunpack.c.l.b16 %v936
          %v1011 = vunpack.c.l.b16 %v937
          %v1012 = vunpack.c.h.b16 %v937
          %v1013 = vunpack.c.l.b16 %v938
          %v1014 = vunpack.c.l.b16 %v939
          %v1015 = vunpack.c.h.b16 %v939
          %v1016 = vunpack.c.l.b16 %v940
          %v1017 = vunpack.c.l.b16 %v941
          %v1018 = vunpack.c.h.b16 %v941
          %v1019 = vunpack.c.l.b16 %v942
          %v1020 = vunpack.c.l.b16 %v943
          %v1021 = vunpack.c.h.b16 %v943
          %v1022 = vunpack.c.l.b16 %v944
          %v1023 = vunpack.c.l.b16 %v945
          %v1024 = vunpack.c.h.b16 %v945
          %v1025 = vunpack.c.l.b16 %v946
          %v1026 = vunpack.c.l.b16 %v947
          %v1027 = vunpack.c.h.b16 %v947
          %v1028 = vunpack.c.l.b16 %v948
          %v1029 = vpack.c.b16 %v984, %v981
          %v1030 = vpack.c.b16 %v985, %v982
          %v1031 = vpack.c.b16 %v986, %v983
          %v1032 = vpack.c.b16 %v990, %v987
          %v1033 = vpack.c.b16 %v991, %v988
          %v1034 = vpack.c.b16 %v992, %v989
          %v1035 = vpack.c.b16 %v996, %v993
          %v1036 = vpack.c.b16 %v997, %v994
          %v1037 = vpack.c.b16 %v998, %v995
          %v1038 = vpack.c.b16 %v1002, %v999
          %v1039 = vpack.c.b16 %v1003, %v1000
          %v1040 = vpack.c.b16 %v1004, %v1001
          %v1041 = vpack.c.b16 %v1008, %v1005
          %v1042 = vpack.c.b16 %v1009, %v1006
          %v1043 = vpack.c.b16 %v1010, %v1007
          %v1044 = vpack.c.b16 %v1014, %v1011
          %v1045 = vpack.c.b16 %v1015, %v1012
          %v1046 = vpack.c.b16 %v1016, %v1013
          %v1047 = vpack.c.b16 %v1020, %v1017
          %v1048 = vpack.c.b16 %v1021, %v1018
          %v1049 = vpack.c.b16 %v1022, %v1019
          %v1050 = vpack.c.b16 %v1026, %v1023
          %v1051 = vpack.c.b16 %v1027, %v1024
          %v1052 = vpack.c.b16 %v1028, %v1025
          %1077 = vmatpush.bf16.msra.mxu0 %v1050
          %1078 = vmatpush.bf16.msra.mxu0 %v1047
          %1079 = vmatpush.bf16.msra.mxu0 %v1044
          %1080 = vmatpush.bf16.msra.mxu0 %v1041
          %1081 = vmatpush.bf16.msra.mxu0 %v1038
          %1082 = vmatpush.bf16.msra.mxu0 %v1035
          %1083 = vmatpush.bf16.msra.mxu0 %v1032
          %1084 = vmatpush.bf16.msra.mxu0 %v1029
          %1085 = vmatmul.bf16.gmra.mxu0 %v915
          %v1086 = vpop.f32.mrf.mxu0
          %v1087 = vadd.f32 0.0, %v1086
          %v1088 = vpop.f32.mrf.mxu0
          %1089 = vdwg.mxu0
          %1090 = vmatpush.bf16.msra.mxu0 %v1051
          %1091 = vmatpush.bf16.msra.mxu0 %v1048
          %1092 = vmatpush.bf16.msra.mxu0 %v1045
          %1093 = vmatpush.bf16.msra.mxu0 %v1042
          %1094 = vmatpush.bf16.msra.mxu0 %v1039
          %1095 = vmatpush.bf16.msra.mxu0 %v1036
          %1096 = vmatpush.bf16.msra.mxu0 %v1033
          %1097 = vmatpush.bf16.msra.mxu0 %v1030
          %1098 = vmatmul.bf16.gmra.mxu0 %v915
          %v1099 = vpop.f32.mrf.mxu0
          %v1100 = vadd.f32 0.0, %v1099
          %v1101 = vpop.f32.mrf.mxu0
          %1102 = vdwg.mxu0
          %1103 = vmatpush.bf16.msra.mxu0 %v1052
          %1104 = vmatpush.bf16.msra.mxu0 %v1049
          %1105 = vmatpush.bf16.msra.mxu0 %v1046
          %1106 = vmatpush.bf16.msra.mxu0 %v1043
          %1107 = vmatpush.bf16.msra.mxu0 %v1040
          %1108 = vmatpush.bf16.msra.mxu0 %v1037
          %1109 = vmatpush.bf16.msra.mxu0 %v1034
          %1110 = vmatpush.bf16.msra.mxu0 %v1031
          %1111 = vmatmul.bf16.gmra.mxu0 %v915
          %v1112 = vpop.f32.mrf.mxu0
          %v1113 = vadd.f32 0.0, %v1112
          %v1114 = vpop.f32.mrf.mxu0
          %1115 = vdwg.mxu0
          %v1116 = vpack.c.bf16 %v914, %v914
          %s1117 = scalar_lea.vmem [#allocation8], 192
          %v1118 = vld [vmem:[%s1117] sm:$0xff]
          %v1119 = vld [vmem:[%s1117 + $0x8] sm:$0xf]
          %v1120 = vld [vmem:[%s1117 + $0xc] sm:$0xff]
          %v1121 = vld [vmem:[%s1117 + $0x14] sm:$0xf]
          %v1122 = vld [vmem:[%s1117 + $0x18] sm:$0xff]
          %v1123 = vld [vmem:[%s1117 + $0x20] sm:$0xf]
          %v1124 = vld [vmem:[%s1117 + $0x24] sm:$0xff]
          %v1125 = vld [vmem:[%s1117 + $0x2c] sm:$0xf]
          %v1126 = vld [vmem:[%s1117 + $0x30] sm:$0xff]
          %v1127 = vld [vmem:[%s1117 + $0x38] sm:$0xf]
          %v1128 = vld [vmem:[%s1117 + $0x3c] sm:$0xff]
          %v1129 = vld [vmem:[%s1117 + $0x44] sm:$0xf]
          %v1130 = vld [vmem:[%s1117 + $0x48] sm:$0xff]
          %v1131 = vld [vmem:[%s1117 + $0x50] sm:$0xf]
          %v1132 = vld [vmem:[%s1117 + $0x54] sm:$0xff]
          %v1133 = vld [vmem:[%s1117 + $0x5c] sm:$0xf]
          %v1134 = vld [vmem:[%s1117 + $0x60] sm:$0xff]
          %v1135 = vld [vmem:[%s1117 + $0x68] sm:$0xf]
          %v1136 = vld [vmem:[%s1117 + $0x6c] sm:$0xff]
          %v1137 = vld [vmem:[%s1117 + $0x74] sm:$0xf]
          %v1138 = vld [vmem:[%s1117 + $0x78] sm:$0xff]
          %v1139 = vld [vmem:[%s1117 + $0x80] sm:$0xf]
          %v1140 = vld [vmem:[%s1117 + $0x84] sm:$0xff]
          %v1141 = vld [vmem:[%s1117 + $0x8c] sm:$0xf]
          %v1142 = vld [vmem:[%s1117 + $0x90] sm:$0xff]
          %v1143 = vld [vmem:[%s1117 + $0x98] sm:$0xf]
          %v1144 = vld [vmem:[%s1117 + $0x9c] sm:$0xff]
          %v1145 = vld [vmem:[%s1117 + $0xa4] sm:$0xf]
          %v1146 = vld [vmem:[%s1117 + $0xa8] sm:$0xff]
          %v1147 = vld [vmem:[%s1117 + $0xb0] sm:$0xf]
          %v1148 = vld [vmem:[%s1117 + $0xb4] sm:$0xff]
          %v1149 = vld [vmem:[%s1117 + $0xbc] sm:$0xf]
          %v1182 = vunpack.c.l.b16 %v1118
          %v1183 = vunpack.c.h.b16 %v1118
          %v1184 = vunpack.c.l.b16 %v1119
          %v1185 = vunpack.c.l.b16 %v1120
          %v1186 = vunpack.c.h.b16 %v1120
          %v1187 = vunpack.c.l.b16 %v1121
          %v1188 = vunpack.c.l.b16 %v1122
          %v1189 = vunpack.c.h.b16 %v1122
          %v1190 = vunpack.c.l.b16 %v1123
          %v1191 = vunpack.c.l.b16 %v1124
          %v1192 = vunpack.c.h.b16 %v1124
          %v1193 = vunpack.c.l.b16 %v1125
          %v1194 = vunpack.c.l.b16 %v1126
          %v1195 = vunpack.c.h.b16 %v1126
          %v1196 = vunpack.c.l.b16 %v1127
          %v1197 = vunpack.c.l.b16 %v1128
          %v1198 = vunpack.c.h.b16 %v1128
          %v1199 = vunpack.c.l.b16 %v1129
          %v1200 = vunpack.c.l.b16 %v1130
          %v1201 = vunpack.c.h.b16 %v1130
          %v1202 = vunpack.c.l.b16 %v1131
          %v1203 = vunpack.c.l.b16 %v1132
          %v1204 = vunpack.c.h.b16 %v1132
          %v1205 = vunpack.c.l.b16 %v1133
          %v1206 = vunpack.c.l.b16 %v1134
          %v1207 = vunpack.c.h.b16 %v1134
          %v1208 = vunpack.c.l.b16 %v1135
          %v1209 = vunpack.c.l.b16 %v1136
          %v1210 = vunpack.c.h.b16 %v1136
          %v1211 = vunpack.c.l.b16 %v1137
          %v1212 = vunpack.c.l.b16 %v1138
          %v1213 = vunpack.c.h.b16 %v1138
          %v1214 = vunpack.c.l.b16 %v1139
          %v1215 = vunpack.c.l.b16 %v1140
          %v1216 = vunpack.c.h.b16 %v1140
          %v1217 = vunpack.c.l.b16 %v1141
          %v1218 = vunpack.c.l.b16 %v1142
          %v1219 = vunpack.c.h.b16 %v1142
          %v1220 = vunpack.c.l.b16 %v1143
          %v1221 = vunpack.c.l.b16 %v1144
          %v1222 = vunpack.c.h.b16 %v1144
          %v1223 = vunpack.c.l.b16 %v1145
          %v1224 = vunpack.c.l.b16 %v1146
          %v1225 = vunpack.c.h.b16 %v1146
          %v1226 = vunpack.c.l.b16 %v1147
          %v1227 = vunpack.c.l.b16 %v1148
          %v1228 = vunpack.c.h.b16 %v1148
          %v1229 = vunpack.c.l.b16 %v1149
          %v1230 = vpack.c.b16 %v1185, %v1182
          %v1231 = vpack.c.b16 %v1186, %v1183
          %v1232 = vpack.c.b16 %v1187, %v1184
          %v1233 = vpack.c.b16 %v1191, %v1188
          %v1234 = vpack.c.b16 %v1192, %v1189
          %v1235 = vpack.c.b16 %v1193, %v1190
          %v1236 = vpack.c.b16 %v1197, %v1194
          %v1237 = vpack.c.b16 %v1198, %v1195
          %v1238 = vpack.c.b16 %v1199, %v1196
          %v1239 = vpack.c.b16 %v1203, %v1200
          %v1240 = vpack.c.b16 %v1204, %v1201
          %v1241 = vpack.c.b16 %v1205, %v1202
          %v1242 = vpack.c.b16 %v1209, %v1206
          %v1243 = vpack.c.b16 %v1210, %v1207
          %v1244 = vpack.c.b16 %v1211, %v1208
          %v1245 = vpack.c.b16 %v1215, %v1212
          %v1246 = vpack.c.b16 %v1216, %v1213
          %v1247 = vpack.c.b16 %v1217, %v1214
          %v1248 = vpack.c.b16 %v1221, %v1218
          %v1249 = vpack.c.b16 %v1222, %v1219
          %v1250 = vpack.c.b16 %v1223, %v1220
          %v1251 = vpack.c.b16 %v1227, %v1224
          %v1252 = vpack.c.b16 %v1228, %v1225
          %v1253 = vpack.c.b16 %v1229, %v1226
          %1278 = vmatpush.bf16.msra.mxu0 %v1251
          %1279 = vmatpush.bf16.msra.mxu0 %v1248
          %1280 = vmatpush.bf16.msra.mxu0 %v1245
          %1281 = vmatpush.bf16.msra.mxu0 %v1242
          %1282 = vmatpush.bf16.msra.mxu0 %v1239
          %1283 = vmatpush.bf16.msra.mxu0 %v1236
          %1284 = vmatpush.bf16.msra.mxu0 %v1233
          %1285 = vmatpush.bf16.msra.mxu0 %v1230
          %1286 = vmatmul.bf16.gmra.mxu0 %v1116
          %v1287 = vpop.f32.mrf.mxu0
          %v1288 = vadd.f32 0.0, %v1287
          %v1289 = vpop.f32.mrf.mxu0
          %1290 = vdwg.mxu0
          %1291 = vmatpush.bf16.msra.mxu0 %v1252
          %1292 = vmatpush.bf16.msra.mxu0 %v1249
          %1293 = vmatpush.bf16.msra.mxu0 %v1246
          %1294 = vmatpush.bf16.msra.mxu0 %v1243
          %1295 = vmatpush.bf16.msra.mxu0 %v1240
          %1296 = vmatpush.bf16.msra.mxu0 %v1237
          %1297 = vmatpush.bf16.msra.mxu0 %v1234
          %1298 = vmatpush.bf16.msra.mxu0 %v1231
          %1299 = vmatmul.bf16.gmra.mxu0 %v1116
          %v1300 = vpop.f32.mrf.mxu0
          %v1301 = vadd.f32 0.0, %v1300
          %v1302 = vpop.f32.mrf.mxu0
          %1303 = vdwg.mxu0
          %1304 = vmatpush.bf16.msra.mxu0 %v1253
          %1305 = vmatpush.bf16.msra.mxu0 %v1250
          %1306 = vmatpush.bf16.msra.mxu0 %v1247
          %1307 = vmatpush.bf16.msra.mxu0 %v1244
          %1308 = vmatpush.bf16.msra.mxu0 %v1241
          %1309 = vmatpush.bf16.msra.mxu0 %v1238
          %1310 = vmatpush.bf16.msra.mxu0 %v1235
          %1311 = vmatpush.bf16.msra.mxu0 %v1232
          %1312 = vmatmul.bf16.gmra.mxu0 %v1116
          %v1313 = vpop.f32.mrf.mxu0
          %v1314 = vadd.f32 0.0, %v1313
          %v1315 = vpop.f32.mrf.mxu0
          %1316 = vdwg.mxu0
          %v1317 = vadd.f32 %v1087, %v1288
          %v1318 = vadd.f32 %v1100, %v1301
          %s1319 = scalar_lea.vmem %s4, 2
          %v1320 = vld [vmem:[%s1319] sm:$0x3]
          %v1322 = vperm.slane %v1320, 0
          %v1323 = vperm.slane %v1320, 1
          %v1326 = vadd.f32 %v1317, %v1322
          %v1327 = vadd.f32 %v1318, %v1323
          %v1328 = vxor.u32 %v1326, 2147483648
          %v1329 = vxor.u32 %v1327, 2147483648
          %v1330 = vmul.f32 %v1328, 1.442695
          %v1331 = vpow.pop %v1330
          %v1332 = vmul.f32 %v1329, 1.442695
          %v1333 = vpow.pop %v1332
          %v1334 = vadd.f32 %v1331, 1.0
          %v1335 = vadd.f32 %v1333, 1.0
          %v1336 = vrcp.pop %v1334
          %v1337 = vmul.f32 %v1334, %v1336
          %v1338 = vsub.f32 1.0, %v1337
          %v1339 = vmul.f32 %v1336, %v1338
          %v1340 = vadd.f32 %v1336, %v1339
          %vm1341 = vweird.f32 %v1334
          %vm1342 = vweird.f32 %v1336
          %vm1343 = vmor %vm1341, %vm1342
          %v1344 = vsel %vm1343, %v1336, %v1340
          %v1345 = vand.u32 2147483647, %v1334
          %vm1346 = vcmp.eq.f32.partialorder %v1345, 8.507059e+37
          %v1347 = vand.u32 %v1334, 2147483648
          %v1348 = vor.u32 1.1754944e-38, %v1347
          %v1349 = vsel %vm1346, %v1348, %v1344
          %v1350 = vmul.f32 1.0, %v1349
          %v1351 = vrcp.pop %v1335
          %v1352 = vmul.f32 %v1335, %v1351
          %v1353 = vsub.f32 1.0, %v1352
          %v1354 = vmul.f32 %v1351, %v1353
          %v1355 = vadd.f32 %v1351, %v1354
          %vm1356 = vweird.f32 %v1335
          %vm1357 = vweird.f32 %v1351
          %vm1358 = vmor %vm1356, %vm1357
          %v1359 = vsel %vm1358, %v1351, %v1355
          %v1360 = vand.u32 2147483647, %v1335
          %vm1361 = vcmp.eq.f32.partialorder %v1360, 8.507059e+37
          %v1362 = vand.u32 %v1335, 2147483648
          %v1363 = vor.u32 1.1754944e-38, %v1362
          %v1364 = vsel %vm1361, %v1363, %v1359
          %v1365 = vmul.f32 1.0, %v1364
          %s1366 = scalar_lea.vmem %s5, 1
          %v1367 = vld [vmem:[%s1366] sm:$0x1]
          %v1369 = vperm.slane %v1367, 0
          %v1371 = vadd.f32 %v1113, %v1369
          %s1372 = scalar_lea.vmem %s6, 1
          %v1373 = vld [vmem:[%s1372] sm:$0x1]
          %v1375 = vperm.slane %v1373, 0
          %v1377 = vadd.f32 %v1314, %v1375
          %v1378 = vmul.f32 %v1350, %v1377
          %v1379 = vadd.f32 %v1371, %v1378
          %v1380 = vtanh.pop %v1379
          %v1381 = vsub.f32 1.0, %v1365
          %v1382 = vmul.f32 %v1381, %v1380
          %v1383 = vmul.f32 %v1365, %v914
          %v1384 = vadd.f32 %v1382, %v1383
          %s1385 = scalar_lea.vmem [#allocation12], 8
          %1386 = vst [vmem:[%s1385] sm:$0xff] %v1384
          %1387 = vst [vmem:[#allocation2] sm:$0xff] %v1384
        $region76: #{decoder_forward.1} parent=55 // pred_fallthru
          _
        %v1388 = vld [vmem:[#allocation2] sm:$0xff]
        %v1389 = vpack.c.bf16 %v1388, %v1388
        %v1390 = vld [vmem:[%s398] sm:$0xf]
        %v1391 = vld [vmem:[%s398 + $0x4] sm:$0xf]
        %v1392 = vld [vmem:[%s398 + $0x8] sm:$0xf]
        %v1393 = vld [vmem:[%s398 + $0xc] sm:$0xf]
        %v1394 = vld [vmem:[%s398 + $0x10] sm:$0xf]
        %v1395 = vld [vmem:[%s398 + $0x14] sm:$0xf]
        %v1396 = vld [vmem:[%s398 + $0x18] sm:$0xf]
        %v1397 = vld [vmem:[%s398 + $0x1c] sm:$0xf]
        %v1398 = vld [vmem:[%s398 + $0x20] sm:$0xf]
        %v1399 = vld [vmem:[%s398 + $0x24] sm:$0xf]
        %v1400 = vld [vmem:[%s398 + $0x28] sm:$0xf]
        %v1401 = vld [vmem:[%s398 + $0x2c] sm:$0xf]
        %v1402 = vld [vmem:[%s398 + $0x30] sm:$0xf]
        %v1403 = vld [vmem:[%s398 + $0x34] sm:$0xf]
        %v1404 = vld [vmem:[%s398 + $0x38] sm:$0xf]
        %v1405 = vld [vmem:[%s398 + $0x3c] sm:$0xf]
        %v1406 = vld [vmem:[%s441] sm:$0x1]
        %v1408 = vperm.slane %v1406, 0
        %v1426 = vunpack.c.l.b16 %v1390
        %v1427 = vunpack.c.l.b16 %v1391
        %v1428 = vunpack.c.l.b16 %v1392
        %v1429 = vunpack.c.l.b16 %v1393
        %v1430 = vunpack.c.l.b16 %v1394
        %v1431 = vunpack.c.l.b16 %v1395
        %v1432 = vunpack.c.l.b16 %v1396
        %v1433 = vunpack.c.l.b16 %v1397
        %v1434 = vunpack.c.l.b16 %v1398
        %v1435 = vunpack.c.l.b16 %v1399
        %v1436 = vunpack.c.l.b16 %v1400
        %v1437 = vunpack.c.l.b16 %v1401
        %v1438 = vunpack.c.l.b16 %v1402
        %v1439 = vunpack.c.l.b16 %v1403
        %v1440 = vunpack.c.l.b16 %v1404
        %v1441 = vunpack.c.l.b16 %v1405
        %v1442 = vpack.c.b16 %v1427, %v1426
        %v1443 = vpack.c.b16 %v1429, %v1428
        %v1444 = vpack.c.b16 %v1431, %v1430
        %v1445 = vpack.c.b16 %v1433, %v1432
        %v1446 = vpack.c.b16 %v1435, %v1434
        %v1447 = vpack.c.b16 %v1437, %v1436
        %v1448 = vpack.c.b16 %v1439, %v1438
        %v1449 = vpack.c.b16 %v1441, %v1440
        %1458 = vmatpush.bf16.msra.mxu0 %v1449
        %1459 = vmatpush.bf16.msra.mxu0 %v1448
        %1460 = vmatpush.bf16.msra.mxu0 %v1447
        %1461 = vmatpush.bf16.msra.mxu0 %v1446
        %1462 = vmatpush.bf16.msra.mxu0 %v1445
        %1463 = vmatpush.bf16.msra.mxu0 %v1444
        %1464 = vmatpush.bf16.msra.mxu0 %v1443
        %1465 = vmatpush.bf16.msra.mxu0 %v1442
        %1466 = vmatmul.bf16.gmra.mxu0 %v1389
        %v1467 = vpop.f32.mrf.mxu0
        %v1468 = vadd.f32 %v1408, %v1467
        %v1469 = vpop.f32.mrf.mxu0
        %1470 = vdwg.mxu0
        %1471 = vst [vmem:[%s436] sm:$0xff] %v1468
        %s1472 = sand.u32 %s238, 1
        %s1473 = scalar_lea.sflag [#allocation5], %s1472
        %s1474 = sand.u32 %s238, 1
        %s1475 = smul.addr %s1474, 8
        %s1476 = scalar_lea.vmem [#allocation11], %s1475
        // Predicated region
        $region77: #{decoder_forward.1} parent=55 // pred_check
          %p1477 = pneg %p248
        $region78: #{decoder_forward.1} parent=55 // pred_check_branch
          %1479 = sbr.rel (%p1477) target = $region80
        $region79: #{decoder_forward.1} parent=55 // pred_region
          %1481 = vsyncadd %s1473, 0
          %s1482 = smul.addr %s31, 8
          %s1483 = scalar_lea.hbm %s9, %s1482
          %s1485 = sshll.u32 %s1476, 4
          %s1486 = int_to_ptr.vmem [resolvable:$true] %s1485
          %s1487 = sshll.u32 %s1483, 4
          %s1488 = int_to_ptr.hbm [resolvable:$true] %s1487
          %1490 = dma.vmem_to_hbm [thread:$0]  %s1486, 128, %s1488, %s1473
        $region80: #{decoder_forward.1} parent=55 // pred_fallthru
          _
        // Predicated region
        $region81: #{decoder_forward.1} parent=55 // pred_check
          %p1491 = pneg %p269
        $region82: #{decoder_forward.1} parent=55 // pred_check_branch
          %1493 = sbr.rel (%p1491) target = $region84
        $region83: #{decoder_forward.1} parent=55 // pred_region
          %1495 = vsyncadd [#allocation13], 0
          %s1496 = sshll.u32 [#allocation12], 4
          %s1497 = int_to_ptr.vmem [resolvable:$true] %s1496
          %s1498 = sshll.u32 %s10, 4
          %s1499 = int_to_ptr.hbm [resolvable:$true] %s1498
          %1504 = dma.vmem_to_hbm [thread:$0]  %s1497, 256, %s1499, [#allocation13], 128, 128, 8
        $region84: #{decoder_forward.1} parent=55 // pred_fallthru
          _
        // Predicated region
        $region85: #{decoder_forward.1} parent=55 // pred_check
          %p1505 = pneg %p269
        $region86: #{decoder_forward.1} parent=55 // pred_check_branch
          %1507 = sbr.rel (%p1505) target = $region88
        $region87: #{decoder_forward.1} parent=55 // pred_region
          %1509 = dma.done [#allocation13], 256
        $region88: #{decoder_forward.1} parent=55 // pred_fallthru
          _
      $region56: #{decoder_forward.1} parent=5 // pred_fallthru
        _
      %p1510 = scmp.le.s32.totalorder 2, %s26
      // Predicated region
      $region89: #{decoder_forward.1} parent=5 // pred_check
        %p1511 = pneg %p1510
      $region90: #{decoder_forward.1} parent=5 // pred_check_branch
        %1513 = sbr.rel (%p1511) target = $region92
      $region91: #{decoder_forward.1} parent=5 // pred_region
        %s1514 = ssub.s32 %s26, 2
        // Predicated region
        $region93: #{decoder_forward.1} parent=91 // pred_check
          %p1515 = pneg %p254
        $region94: #{decoder_forward.1} parent=91 // pred_check_branch
          %1517 = sbr.rel (%p1515) target = $region96
        $region95: #{decoder_forward.1} parent=91 // pred_region
          %s1518 = sand.u32 %s239, 1
          %s1519 = scalar_lea.sflag [#allocation5], %s1518
          %s1520 = sand.u32 %s239, 1
          %s1521 = smul.addr %s1520, 8
          %s1522 = scalar_lea.vmem [#allocation11], %s1521
          %1524 = dma.done %s1519, 128
        $region96: #{decoder_forward.1} parent=91 // pred_fallthru
          _
      $region92: #{decoder_forward.1} parent=5 // pred_fallthru
        _
    $region6: #{decoder_forward.1} parent=1 // loop_footer
      %s30 = sadd.s32 1, %s26
    $region7: #{decoder_forward.1} parent=1 // loop_footer_branch
      %25 = sbr.rel target = $region3
    $region8: #{decoder_forward.1} parent=1 // loop_exit
      _
    %1525 = vsyncpa [#allocation4], 1
    %s1526 = scalar_lea.sflag [#allocation4], 1
    %1527 = vsyncpa %s1526, 1
    %1528 = vsyncpa [#allocation7], 1
    %1529 = vsyncpa [#allocation10], 1
    %s1530 = scalar_lea.sflag [#allocation10], 1
    %1531 = vsyncpa %s1530, 1
    %1532 = vsyncpa [#allocation5], 1
    %s1533 = scalar_lea.sflag [#allocation5], 1
    %1534 = vsyncpa %s1533, 1
    %1535 = vsyncpa [#allocation13], 1

</llo_original>
